<compile_context>
chip_gen: v5e
topology: v5e:2x2
jax: 0.10.0
libtpu: 0.0.40
codegen_flags: <defaults>
</compile_context>

<pallas_src>
import functools

import jax
import jax.numpy as jnp
from jax import lax
from jax.experimental import pallas as pl
from jax.experimental.pallas import tpu as pltpu


def _rnn_rollout_kernel(x_ref, h0_ref, w1_ref, b1_ref, wga_ref, wgh_ref,
                        bg_ref, w2_ref, b2_ref, q_ref, hout_ref,
                        *, hidden_dim, n_steps):
    """Full T-step rollout of fc1 -> ReLU -> GRUCell -> fc2 in one grid step."""
    H = hidden_dim
    mm_dtype = wga_ref.dtype          # f32 or bf16 (weights decide)

    # Weights/biases: read from VMEM once, stay vreg-resident across the
    # unrolled loop (tiny: ~40 KiB total at these sizes).
    w1, b1 = w1_ref[...], b1_ref[...]
    wga, wgh, bg = wga_ref[...], wgh_ref[...], bg_ref[...]
    w2, b2 = w2_ref[...], b2_ref[...]

    def step(t, h):
        x = x_ref[t]                                            # (B, F)

        # fc1 + ReLU
        z1 = jnp.dot(x.astype(mm_dtype), w1,
                     preferred_element_type=jnp.float32) + b1
        a = jnp.maximum(z1, 0.0)                                # (B, H) f32

        # Gates, lane-dense (B, 4H): columns [r | z | n_i | n_h].
        # The r/z column blocks of wga/wgh already sum gi+gh in the matmul.
        g = (jnp.dot(a.astype(mm_dtype), wga, preferred_element_type=jnp.float32)
             + jnp.dot(h.astype(mm_dtype), wgh, preferred_element_type=jnp.float32)
             + bg)
        r = jax.nn.sigmoid(g[:, 0:H])
        z = jax.nn.sigmoid(g[:, H:2 * H])
        n = jnp.tanh(g[:, 2 * H:3 * H] + r * g[:, 3 * H:4 * H])
        h_new = (1.0 - z) * n + z * h                           # (B, H) f32

        # fc2
        q = jnp.dot(h_new.astype(mm_dtype), w2,
                    preferred_element_type=jnp.float32) + b2
        q_ref[t] = q.astype(q_ref.dtype)
        return h_new

    h0 = h0_ref[...].astype(jnp.float32)
    h_final = lax.fori_loop(0, n_steps, step, h0, unroll=True)
    hout_ref[...] = h_final.astype(hout_ref.dtype)


def prepare_params(params, matmul_dtype=jnp.float32):
    """One-time weight prep (call once per model, NOT per forward step).

    Builds lane-tile-friendly fused gate weights:
      w_g_a: (H, 4H) = [W_ih_r^T | W_ih_z^T | W_ih_n^T |     0    ]
      w_g_h: (H, 4H) = [W_hh_r^T | W_hh_z^T |     0    | W_hh_n^T ]
      b_g:   (1, 4H) = [b_ih_r+b_hh_r | b_ih_z+b_hh_z | b_ih_n | b_hh_n]
    so g = a @ w_g_a + h @ w_g_h + b_g gives r/z already summed and n split.
    Weights may be cast to bf16 on any generation (MXU-native); biases stay
    f32 (added post-matmul in f32).
    """
    H = params["w_hh"].shape[1]
    wih_t = params["w_ih"].T                       # (H, 3H), columns [r|z|n]
    whh_t = params["w_hh"].T                       # (H, 3H)
    zeros = jnp.zeros((H, H), wih_t.dtype)
    w_g_a = jnp.concatenate(
        [wih_t[:, 0:H], wih_t[:, H:2 * H], wih_t[:, 2 * H:3 * H], zeros], axis=1)
    w_g_h = jnp.concatenate(
        [whh_t[:, 0:H], whh_t[:, H:2 * H], zeros, whh_t[:, 2 * H:3 * H]], axis=1)
    b_ih, b_hh = params["b_ih"], params["b_hh"]
    b_g = jnp.concatenate(
        [b_ih[0:H] + b_hh[0:H],
         b_ih[H:2 * H] + b_hh[H:2 * H],
         b_ih[2 * H:3 * H],
         b_hh[2 * H:3 * H]]).reshape(1, -1)                      # (1, 4H)
    return {
        "w1": params["w_fc1"].T.astype(matmul_dtype),            # (F, H)
        "b1": params["b_fc1"].reshape(1, -1).astype(jnp.float32),
        "w_g_a": w_g_a.astype(matmul_dtype),                     # (H, 4H)
        "w_g_h": w_g_h.astype(matmul_dtype),                     # (H, 4H)
        "b_g": b_g.astype(jnp.float32),                          # (1, 4H)
        "w2": params["w_fc2"].T.astype(matmul_dtype),            # (H, A)
        "b2": params["b_fc2"].reshape(1, -1).astype(jnp.float32),
    }


def rnn_model_forward(x, hidden_state, prep):
    """Pallas forward of RNNModel.

    x:            (B, F) single step (module semantics) or (T, B, F) rollout.
    hidden_state: reshapeable to (B, H) row-major (PyTorch passes (1, B*H)).
    prep:         output of prepare_params().
    Returns (q, h): q is (B, A) or (T, B, A); h is the final (B, H) state.
    """
    single_step = x.ndim == 2
    x_seq = x[None] if single_step else x
    T, B, F = x_seq.shape
    H = prep["w_g_a"].shape[0]
    A = prep["w2"].shape[1]

    h0 = hidden_state.reshape(B, H).astype(jnp.float32)

    c2 = lambda i: (0, 0)
    c3 = lambda i: (0, 0, 0)

    cost = pl.CostEstimate(
        flops=2 * T * B * (F * H + 2 * H * 4 * H + H * A),
        transcendentals=3 * T * B * H,
        bytes_accessed=int(
            sum(int(v.size) * v.dtype.itemsize for v in prep.values())
            + x_seq.size * x_seq.dtype.itemsize
            + (T * B * A + 2 * B * H) * 4),
    )

    kernel = functools.partial(_rnn_rollout_kernel, hidden_dim=H, n_steps=T)

    q_seq, h_out = pl.pallas_call(
        kernel,
        grid=(1,),                                  # single step; loop is in-kernel
        in_specs=[
            pl.BlockSpec((T, B, F), c3),            # whole x slab, VMEM resident
            pl.BlockSpec((B, H), c2),
            pl.BlockSpec(prep["w1"].shape, c2),
            pl.BlockSpec(prep["b1"].shape, c2),
            pl.BlockSpec(prep["w_g_a"].shape, c2),
            pl.BlockSpec(prep["w_g_h"].shape, c2),
            pl.BlockSpec(prep["b_g"].shape, c2),
            pl.BlockSpec(prep["w2"].shape, c2),
            pl.BlockSpec(prep["b2"].shape, c2),
        ],
        out_specs=(
            pl.BlockSpec((T, B, A), c3),
            pl.BlockSpec((B, H), c2),
        ),
        out_shape=(
            jax.ShapeDtypeStruct((T, B, A), jnp.float32),
            jax.ShapeDtypeStruct((B, H), jnp.float32),
        ),
        compiler_params=pltpu.CompilerParams(
            dimension_semantics=("arbitrary",),
        ),
        cost_estimate=cost,
    )(x_seq, h0, prep["w1"], prep["b1"], prep["w_g_a"], prep["w_g_h"],
      prep["b_g"], prep["w2"], prep["b2"])

    if single_step:
        return q_seq[0], h_out
    return q_seq, h_out


# ----------------------------- reference & init -----------------------------

def _reference_rollout(x_seq, h0, params):
    H = h0.shape[1]

    def step(h, x):
        a = jax.nn.relu(x @ params["w_fc1"].T + params["b_fc1"])
        gi = a @ params["w_ih"].T + params["b_ih"]
        gh = h @ params["w_hh"].T + params["b_hh"]
        r = jax.nn.sigmoid(gi[:, :H] + gh[:, :H])
        z = jax.nn.sigmoid(gi[:, H:2 * H] + gh[:, H:2 * H])
        n = jnp.tanh(gi[:, 2 * H:] + r * gh[:, 2 * H:])
        h_new = (1.0 - z) * n + z * h
        q = h_new @ params["w_fc2"].T + params["b_fc2"]
        return h_new, q

    h_final, q_seq = jax.lax.scan(step, h0, x_seq)
    return q_seq, h_final


def init_params(key, input_shape, n_hidden, n_actions):
    ks = jax.random.split(key, 8)

    def u(k, shape, fan_in):
        bound = 1.0 / jnp.sqrt(fan_in)
        return jax.random.uniform(k, shape, jnp.float32, -bound, bound)

    return {
        "w_fc1": u(ks[0], (n_hidden, input_shape), input_shape),
        "b_fc1": u(ks[1], (n_hidden,), input_shape),
        "w_ih":  u(ks[2], (3 * n_hidden, n_hidden), n_hidden),
        "b_ih":  u(ks[3], (3 * n_hidden,), n_hidden),
        "w_hh":  u(ks[4], (3 * n_hidden, n_hidden), n_hidden),
        "b_hh":  u(ks[5], (3 * n_hidden,), n_hidden),
        "w_fc2": u(ks[6], (n_actions, n_hidden), n_hidden),
        "b_fc2": u(ks[7], (n_actions,), n_hidden),
    }


if __name__ == "__main__":
    key = jax.random.PRNGKey(0)
    T, B = 8, 8              # rollout length, batch (B >= 8 fills vreg sublanes)
    input_shape = 16         # e.g. 4 + 3*len(friends) + 4*len(enemies) from process()
    n_hidden = 32
    n_actions = 8

    k_x, k_h, k_p = jax.random.split(key, 3)
    x_seq = jax.random.normal(k_x, (T, B, input_shape), jnp.float32)
    hidden = jax.random.normal(k_h, (1, B * n_hidden), jnp.float32)  # torch layout
    params = init_params(k_p, input_shape, n_hidden, n_actions)

    prep = prepare_params(params)            # once, outside the hot path
    fwd = jax.jit(rnn_model_forward)

    # Multi-step rollout: whole time loop inside one kernel invocation.
    q_seq, h_final = fwd(x_seq, hidden, prep)
    jax.block_until_ready((q_seq, h_final))

    q_ref, h_ref = _reference_rollout(x_seq, hidden.reshape(B, n_hidden), params)
    assert jnp.allclose(q_seq, q_ref, atol=1e-3, rtol=1e-3)
    assert jnp.allclose(h_final, h_ref, atol=1e-3, rtol=1e-3)

    # Single-step call: exact RNNModel.forward(inputs, hidden_state) semantics.
    q1, h1 = fwd(x_seq[0], hidden, prep)
    jax.block_until_ready((q1, h1))
    q_ref1, h_ref1 = _reference_rollout(x_seq[:1], hidden.reshape(B, n_hidden), params)
    assert jnp.allclose(q1, q_ref1[0], atol=1e-3, rtol=1e-3)
    assert jnp.allclose(h1, h_ref1, atol=1e-3, rtol=1e-3)

    # bf16 matmul operands (MXU-native on v5e/v6e/v7x): check against the f32
    # reference with a tolerance (recurrence accumulates small rounding).
    prep_bf16 = prepare_params(params, matmul_dtype=jnp.bfloat16)
    q_b, h_b = fwd(x_seq, hidden, prep_bf16)
    jax.block_until_ready((q_b, h_b))
    assert jnp.allclose(q_b, q_ref, atol=1e-1, rtol=1e-1)
    assert jnp.allclose(h_b, h_ref, atol=1e-1, rtol=1e-1)

    print("KERNEL_OK")
</pallas_src>

<mosaic_0001>
module attributes {stable_mosaic.version = 11 : i64} {
  func.func @_rnn_rollout_kernel(%arg0: i32, %arg1: memref<8x8x16xf32, #tpu.memory_space<vmem>>, %arg2: memref<8x32xf32, #tpu.memory_space<vmem>>, %arg3: memref<16x32xf32, #tpu.memory_space<vmem>>, %arg4: memref<1x32xf32, #tpu.memory_space<vmem>>, %arg5: memref<32x128xf32, #tpu.memory_space<vmem>>, %arg6: memref<32x128xf32, #tpu.memory_space<vmem>>, %arg7: memref<1x128xf32, #tpu.memory_space<vmem>>, %arg8: memref<32x8xf32, #tpu.memory_space<vmem>>, %arg9: memref<1x8xf32, #tpu.memory_space<vmem>>, %arg10: memref<8x8x8xf32, #tpu.memory_space<vmem>>, %arg11: memref<8x32xf32, #tpu.memory_space<vmem>>) attributes {dimension_semantics = [#tpu.dimension_semantics<arbitrary>], iteration_bounds = array<i64: 1>, scalar_prefetch = 0 : i64, scratch_operands = 0 : i64, tpu.core_type = #tpu.core_type<tc>, window_params = [{pipeline_mode = #tpu.pipeline_mode<synchronous>, transform_indices = @transform_0, window_bounds = array<i64: 8, 8, 16>}, {pipeline_mode = #tpu.pipeline_mode<synchronous>, transform_indices = @transform_1, window_bounds = array<i64: 8, 32>}, {pipeline_mode = #tpu.pipeline_mode<synchronous>, transform_indices = @transform_2, window_bounds = array<i64: 16, 32>}, {pipeline_mode = #tpu.pipeline_mode<synchronous>, transform_indices = @transform_3, window_bounds = array<i64: 1, 32>}, {pipeline_mode = #tpu.pipeline_mode<synchronous>, transform_indices = @transform_4, window_bounds = array<i64: 32, 128>}, {pipeline_mode = #tpu.pipeline_mode<synchronous>, transform_indices = @transform_5, window_bounds = array<i64: 32, 128>}, {pipeline_mode = #tpu.pipeline_mode<synchronous>, transform_indices = @transform_6, window_bounds = array<i64: 1, 128>}, {pipeline_mode = #tpu.pipeline_mode<synchronous>, transform_indices = @transform_7, window_bounds = array<i64: 32, 8>}, {pipeline_mode = #tpu.pipeline_mode<synchronous>, transform_indices = @transform_8, window_bounds = array<i64: 1, 8>}, {pipeline_mode = #tpu.pipeline_mode<synchronous>, transform_indices = @transform_9, window_bounds = array<i64: 8, 8, 8>}, {pipeline_mode = #tpu.pipeline_mode<synchronous>, transform_indices = @transform_10, window_bounds = array<i64: 8, 32>}]} {
    %c0 = arith.constant 0 : index
    %c0_0 = arith.constant 0 : index
    %0 = vector.load %arg3[%c0, %c0_0] : memref<16x32xf32, #tpu.memory_space<vmem>>, vector<16x32xf32>
    %c0_1 = arith.constant 0 : index
    %c0_2 = arith.constant 0 : index
    %1 = vector.load %arg4[%c0_1, %c0_2] : memref<1x32xf32, #tpu.memory_space<vmem>>, vector<1x32xf32>
    %c0_3 = arith.constant 0 : index
    %c0_4 = arith.constant 0 : index
    %2 = vector.load %arg5[%c0_3, %c0_4] : memref<32x128xf32, #tpu.memory_space<vmem>>, vector<32x128xf32>
    %c0_5 = arith.constant 0 : index
    %c0_6 = arith.constant 0 : index
    %3 = vector.load %arg6[%c0_5, %c0_6] : memref<32x128xf32, #tpu.memory_space<vmem>>, vector<32x128xf32>
    %c0_7 = arith.constant 0 : index
    %c0_8 = arith.constant 0 : index
    %4 = vector.load %arg7[%c0_7, %c0_8] : memref<1x128xf32, #tpu.memory_space<vmem>>, vector<1x128xf32>
    %c0_9 = arith.constant 0 : index
    %c0_10 = arith.constant 0 : index
    %5 = vector.load %arg8[%c0_9, %c0_10] : memref<32x8xf32, #tpu.memory_space<vmem>>, vector<32x8xf32>
    %c0_11 = arith.constant 0 : index
    %c0_12 = arith.constant 0 : index
    %6 = vector.load %arg9[%c0_11, %c0_12] : memref<1x8xf32, #tpu.memory_space<vmem>>, vector<1x8xf32>
    %c0_13 = arith.constant 0 : index
    %c0_14 = arith.constant 0 : index
    %7 = vector.load %arg2[%c0_13, %c0_14] : memref<8x32xf32, #tpu.memory_space<vmem>>, vector<8x32xf32>
    %c0_i32 = arith.constant 0 : i32
    %8 = arith.index_cast %c0_i32 : i32 to index
    %c0_15 = arith.constant 0 : index
    %c0_16 = arith.constant 0 : index
    %9 = vector.load %arg1[%8, %c0_15, %c0_16] : memref<8x8x16xf32, #tpu.memory_space<vmem>>, vector<1x8x16xf32>
    %10 = vector.shape_cast %9 : vector<1x8x16xf32> to vector<8x16xf32>
    %cst = arith.constant dense<0.000000e+00> : vector<8x32xf32>
    %11 = tpu.matmul %10, %0, %cst {dimension_numbers = #tpu.dot_dimension_numbers<[1], [0], [0], [1], [0, 0, 1, 1], [], []>} : vector<8x16xf32>, vector<16x32xf32>, vector<8x32xf32> -> vector<8x32xf32>
    %12 = vector.broadcast %1 : vector<1x32xf32> to vector<8x32xf32>
    %13 = arith.addf %11, %12 : vector<8x32xf32>
    %cst_17 = arith.constant 0.000000e+00 : f32
    %14 = vector.broadcast %cst_17 : f32 to vector<8x32xf32>
    %15 = arith.maximumf %13, %14 : vector<8x32xf32>
    %cst_18 = arith.constant dense<0.000000e+00> : vector<8x128xf32>
    %16 = tpu.matmul %15, %2, %cst_18 {dimension_numbers = #tpu.dot_dimension_numbers<[1], [0], [0], [1], [0, 0, 1, 1], [], []>} : vector<8x32xf32>, vector<32x128xf32>, vector<8x128xf32> -> vector<8x128xf32>
    %cst_19 = arith.constant dense<0.000000e+00> : vector<8x128xf32>
    %17 = tpu.matmul %7, %3, %cst_19 {dimension_numbers = #tpu.dot_dimension_numbers<[1], [0], [0], [1], [0, 0, 1, 1], [], []>} : vector<8x32xf32>, vector<32x128xf32>, vector<8x128xf32> -> vector<8x128xf32>
    %18 = arith.addf %16, %17 : vector<8x128xf32>
    %19 = vector.broadcast %4 : vector<1x128xf32> to vector<8x128xf32>
    %20 = arith.addf %18, %19 : vector<8x128xf32>
    %21 = vector.extract_strided_slice %20 {offsets = [0, 0], sizes = [8, 32], strides = [1, 1]} : vector<8x128xf32> to vector<8x32xf32>
    %22 = arith.negf %21 : vector<8x32xf32>
    %23 = math.exp %22 : vector<8x32xf32>
    %cst_20 = arith.constant 1.000000e+00 : f32
    %24 = vector.broadcast %cst_20 : f32 to vector<8x32xf32>
    %25 = arith.addf %24, %23 : vector<8x32xf32>
    %26 = arith.divf %24, %25 : vector<8x32xf32>
    %27 = vector.extract_strided_slice %20 {offsets = [0, 32], sizes = [8, 32], strides = [1, 1]} : vector<8x128xf32> to vector<8x32xf32>
    %28 = arith.negf %27 : vector<8x32xf32>
    %29 = math.exp %28 : vector<8x32xf32>
    %cst_21 = arith.constant 1.000000e+00 : f32
    %30 = vector.broadcast %cst_21 : f32 to vector<8x32xf32>
    %31 = arith.addf %30, %29 : vector<8x32xf32>
    %32 = arith.divf %30, %31 : vector<8x32xf32>
    %33 = vector.extract_strided_slice %20 {offsets = [0, 64], sizes = [8, 32], strides = [1, 1]} : vector<8x128xf32> to vector<8x32xf32>
    %34 = vector.extract_strided_slice %20 {offsets = [0, 96], sizes = [8, 32], strides = [1, 1]} : vector<8x128xf32> to vector<8x32xf32>
    %35 = arith.mulf %26, %34 : vector<8x32xf32>
    %36 = arith.addf %33, %35 : vector<8x32xf32>
    %37 = math.tanh %36 : vector<8x32xf32>
    %cst_22 = arith.constant 1.000000e+00 : f32
    %38 = vector.broadcast %cst_22 : f32 to vector<8x32xf32>
    %39 = arith.subf %38, %32 : vector<8x32xf32>
    %40 = arith.mulf %39, %37 : vector<8x32xf32>
    %41 = arith.mulf %32, %7 : vector<8x32xf32>
    %42 = arith.addf %40, %41 : vector<8x32xf32>
    %cst_23 = arith.constant dense<0.000000e+00> : vector<8x8xf32>
    %43 = tpu.matmul %42, %5, %cst_23 {dimension_numbers = #tpu.dot_dimension_numbers<[1], [0], [0], [1], [0, 0, 1, 1], [], []>} : vector<8x32xf32>, vector<32x8xf32>, vector<8x8xf32> -> vector<8x8xf32>
    %44 = vector.broadcast %6 : vector<1x8xf32> to vector<8x8xf32>
    %45 = arith.addf %43, %44 : vector<8x8xf32>
    %46 = arith.index_cast %c0_i32 : i32 to index
    %c0_24 = arith.constant 0 : index
    %c0_25 = arith.constant 0 : index
    %47 = vector.load %arg10[%46, %c0_24, %c0_25] : memref<8x8x8xf32, #tpu.memory_space<vmem>>, vector<1x8x8xf32>
    %48 = vector.shape_cast %47 : vector<1x8x8xf32> to vector<8x8xf32>
    %49 = vector.shape_cast %45 : vector<8x8xf32> to vector<1x8x8xf32>
    tpu.vector_store %arg10[%46, %c0_24, %c0_25], %49 {strides = array<i32>} : memref<8x8x8xf32, #tpu.memory_space<vmem>>, vector<1x8x8xf32>,
    %c1_i32 = arith.constant 1 : i32
    %50 = arith.index_cast %c1_i32 : i32 to index
    %c0_26 = arith.constant 0 : index
    %c0_27 = arith.constant 0 : index
    %51 = vector.load %arg1[%50, %c0_26, %c0_27] : memref<8x8x16xf32, #tpu.memory_space<vmem>>, vector<1x8x16xf32>
    %52 = vector.shape_cast %51 : vector<1x8x16xf32> to vector<8x16xf32>
    %cst_28 = arith.constant dense<0.000000e+00> : vector<8x32xf32>
    %53 = tpu.matmul %52, %0, %cst_28 {dimension_numbers = #tpu.dot_dimension_numbers<[1], [0], [0], [1], [0, 0, 1, 1], [], []>} : vector<8x16xf32>, vector<16x32xf32>, vector<8x32xf32> -> vector<8x32xf32>
    %54 = vector.broadcast %1 : vector<1x32xf32> to vector<8x32xf32>
    %55 = arith.addf %53, %54 : vector<8x32xf32>
    %cst_29 = arith.constant 0.000000e+00 : f32
    %56 = vector.broadcast %cst_29 : f32 to vector<8x32xf32>
    %57 = arith.maximumf %55, %56 : vector<8x32xf32>
    %cst_30 = arith.constant dense<0.000000e+00> : vector<8x128xf32>
    %58 = tpu.matmul %57, %2, %cst_30 {dimension_numbers = #tpu.dot_dimension_numbers<[1], [0], [0], [1], [0, 0, 1, 1], [], []>} : vector<8x32xf32>, vector<32x128xf32>, vector<8x128xf32> -> vector<8x128xf32>
    %cst_31 = arith.constant dense<0.000000e+00> : vector<8x128xf32>
    %59 = tpu.matmul %42, %3, %cst_31 {dimension_numbers = #tpu.dot_dimension_numbers<[1], [0], [0], [1], [0, 0, 1, 1], [], []>} : vector<8x32xf32>, vector<32x128xf32>, vector<8x128xf32> -> vector<8x128xf32>
    %60 = arith.addf %58, %59 : vector<8x128xf32>
    %61 = vector.broadcast %4 : vector<1x128xf32> to vector<8x128xf32>
    %62 = arith.addf %60, %61 : vector<8x128xf32>
    %63 = vector.extract_strided_slice %62 {offsets = [0, 0], sizes = [8, 32], strides = [1, 1]} : vector<8x128xf32> to vector<8x32xf32>
    %64 = arith.negf %63 : vector<8x32xf32>
    %65 = math.exp %64 : vector<8x32xf32>
    %cst_32 = arith.constant 1.000000e+00 : f32
    %66 = vector.broadcast %cst_32 : f32 to vector<8x32xf32>
    %67 = arith.addf %66, %65 : vector<8x32xf32>
    %68 = arith.divf %66, %67 : vector<8x32xf32>
    %69 = vector.extract_strided_slice %62 {offsets = [0, 32], sizes = [8, 32], strides = [1, 1]} : vector<8x128xf32> to vector<8x32xf32>
    %70 = arith.negf %69 : vector<8x32xf32>
    %71 = math.exp %70 : vector<8x32xf32>
    %cst_33 = arith.constant 1.000000e+00 : f32
    %72 = vector.broadcast %cst_33 : f32 to vector<8x32xf32>
    %73 = arith.addf %72, %71 : vector<8x32xf32>
    %74 = arith.divf %72, %73 : vector<8x32xf32>
    %75 = vector.extract_strided_slice %62 {offsets = [0, 64], sizes = [8, 32], strides = [1, 1]} : vector<8x128xf32> to vector<8x32xf32>
    %76 = vector.extract_strided_slice %62 {offsets = [0, 96], sizes = [8, 32], strides = [1, 1]} : vector<8x128xf32> to vector<8x32xf32>
    %77 = arith.mulf %68, %76 : vector<8x32xf32>
    %78 = arith.addf %75, %77 : vector<8x32xf32>
    %79 = math.tanh %78 : vector<8x32xf32>
    %cst_34 = arith.constant 1.000000e+00 : f32
    %80 = vector.broadcast %cst_34 : f32 to vector<8x32xf32>
    %81 = arith.subf %80, %74 : vector<8x32xf32>
    %82 = arith.mulf %81, %79 : vector<8x32xf32>
    %83 = arith.mulf %74, %42 : vector<8x32xf32>
    %84 = arith.addf %82, %83 : vector<8x32xf32>
    %cst_35 = arith.constant dense<0.000000e+00> : vector<8x8xf32>
    %85 = tpu.matmul %84, %5, %cst_35 {dimension_numbers = #tpu.dot_dimension_numbers<[1], [0], [0], [1], [0, 0, 1, 1], [], []>} : vector<8x32xf32>, vector<32x8xf32>, vector<8x8xf32> -> vector<8x8xf32>
    %86 = vector.broadcast %6 : vector<1x8xf32> to vector<8x8xf32>
    %87 = arith.addf %85, %86 : vector<8x8xf32>
    %88 = arith.index_cast %c1_i32 : i32 to index
    %c0_36 = arith.constant 0 : index
    %c0_37 = arith.constant 0 : index
    %89 = vector.load %arg10[%88, %c0_36, %c0_37] : memref<8x8x8xf32, #tpu.memory_space<vmem>>, vector<1x8x8xf32>
    %90 = vector.shape_cast %89 : vector<1x8x8xf32> to vector<8x8xf32>
    %91 = vector.shape_cast %87 : vector<8x8xf32> to vector<1x8x8xf32>
    tpu.vector_store %arg10[%88, %c0_36, %c0_37], %91 {strides = array<i32>} : memref<8x8x8xf32, #tpu.memory_space<vmem>>, vector<1x8x8xf32>,
    %c2_i32 = arith.constant 2 : i32
    %92 = arith.index_cast %c2_i32 : i32 to index
    %c0_38 = arith.constant 0 : index
    %c0_39 = arith.constant 0 : index
    %93 = vector.load %arg1[%92, %c0_38, %c0_39] : memref<8x8x16xf32, #tpu.memory_space<vmem>>, vector<1x8x16xf32>
    %94 = vector.shape_cast %93 : vector<1x8x16xf32> to vector<8x16xf32>
    %cst_40 = arith.constant dense<0.000000e+00> : vector<8x32xf32>
    %95 = tpu.matmul %94, %0, %cst_40 {dimension_numbers = #tpu.dot_dimension_numbers<[1], [0], [0], [1], [0, 0, 1, 1], [], []>} : vector<8x16xf32>, vector<16x32xf32>, vector<8x32xf32> -> vector<8x32xf32>
    %96 = vector.broadcast %1 : vector<1x32xf32> to vector<8x32xf32>
    %97 = arith.addf %95, %96 : vector<8x32xf32>
    %cst_41 = arith.constant 0.000000e+00 : f32
    %98 = vector.broadcast %cst_41 : f32 to vector<8x32xf32>
    %99 = arith.maximumf %97, %98 : vector<8x32xf32>
    %cst_42 = arith.constant dense<0.000000e+00> : vector<8x128xf32>
    %100 = tpu.matmul %99, %2, %cst_42 {dimension_numbers = #tpu.dot_dimension_numbers<[1], [0], [0], [1], [0, 0, 1, 1], [], []>} : vector<8x32xf32>, vector<32x128xf32>, vector<8x128xf32> -> vector<8x128xf32>
    %cst_43 = arith.constant dense<0.000000e+00> : vector<8x128xf32>
    %101 = tpu.matmul %84, %3, %cst_43 {dimension_numbers = #tpu.dot_dimension_numbers<[1], [0], [0], [1], [0, 0, 1, 1], [], []>} : vector<8x32xf32>, vector<32x128xf32>, vector<8x128xf32> -> vector<8x128xf32>
    %102 = arith.addf %100, %101 : vector<8x128xf32>
    %103 = vector.broadcast %4 : vector<1x128xf32> to vector<8x128xf32>
    %104 = arith.addf %102, %103 : vector<8x128xf32>
    %105 = vector.extract_strided_slice %104 {offsets = [0, 0], sizes = [8, 32], strides = [1, 1]} : vector<8x128xf32> to vector<8x32xf32>
    %106 = arith.negf %105 : vector<8x32xf32>
    %107 = math.exp %106 : vector<8x32xf32>
    %cst_44 = arith.constant 1.000000e+00 : f32
    %108 = vector.broadcast %cst_44 : f32 to vector<8x32xf32>
    %109 = arith.addf %108, %107 : vector<8x32xf32>
    %110 = arith.divf %108, %109 : vector<8x32xf32>
    %111 = vector.extract_strided_slice %104 {offsets = [0, 32], sizes = [8, 32], strides = [1, 1]} : vector<8x128xf32> to vector<8x32xf32>
    %112 = arith.negf %111 : vector<8x32xf32>
    %113 = math.exp %112 : vector<8x32xf32>
    %cst_45 = arith.constant 1.000000e+00 : f32
    %114 = vector.broadcast %cst_45 : f32 to vector<8x32xf32>
    %115 = arith.addf %114, %113 : vector<8x32xf32>
    %116 = arith.divf %114, %115 : vector<8x32xf32>
    %117 = vector.extract_strided_slice %104 {offsets = [0, 64], sizes = [8, 32], strides = [1, 1]} : vector<8x128xf32> to vector<8x32xf32>
    %118 = vector.extract_strided_slice %104 {offsets = [0, 96], sizes = [8, 32], strides = [1, 1]} : vector<8x128xf32> to vector<8x32xf32>
    %119 = arith.mulf %110, %118 : vector<8x32xf32>
    %120 = arith.addf %117, %119 : vector<8x32xf32>
    %121 = math.tanh %120 : vector<8x32xf32>
    %cst_46 = arith.constant 1.000000e+00 : f32
    %122 = vector.broadcast %cst_46 : f32 to vector<8x32xf32>
    %123 = arith.subf %122, %116 : vector<8x32xf32>
    %124 = arith.mulf %123, %121 : vector<8x32xf32>
    %125 = arith.mulf %116, %84 : vector<8x32xf32>
    %126 = arith.addf %124, %125 : vector<8x32xf32>
    %cst_47 = arith.constant dense<0.000000e+00> : vector<8x8xf32>
    %127 = tpu.matmul %126, %5, %cst_47 {dimension_numbers = #tpu.dot_dimension_numbers<[1], [0], [0], [1], [0, 0, 1, 1], [], []>} : vector<8x32xf32>, vector<32x8xf32>, vector<8x8xf32> -> vector<8x8xf32>
    %128 = vector.broadcast %6 : vector<1x8xf32> to vector<8x8xf32>
    %129 = arith.addf %127, %128 : vector<8x8xf32>
    %130 = arith.index_cast %c2_i32 : i32 to index
    %c0_48 = arith.constant 0 : index
    %c0_49 = arith.constant 0 : index
    %131 = vector.load %arg10[%130, %c0_48, %c0_49] : memref<8x8x8xf32, #tpu.memory_space<vmem>>, vector<1x8x8xf32>
    %132 = vector.shape_cast %131 : vector<1x8x8xf32> to vector<8x8xf32>
    %133 = vector.shape_cast %129 : vector<8x8xf32> to vector<1x8x8xf32>
    tpu.vector_store %arg10[%130, %c0_48, %c0_49], %133 {strides = array<i32>} : memref<8x8x8xf32, #tpu.memory_space<vmem>>, vector<1x8x8xf32>,
    %c3_i32 = arith.constant 3 : i32
    %134 = arith.index_cast %c3_i32 : i32 to index
    %c0_50 = arith.constant 0 : index
    %c0_51 = arith.constant 0 : index
    %135 = vector.load %arg1[%134, %c0_50, %c0_51] : memref<8x8x16xf32, #tpu.memory_space<vmem>>, vector<1x8x16xf32>
    %136 = vector.shape_cast %135 : vector<1x8x16xf32> to vector<8x16xf32>
    %cst_52 = arith.constant dense<0.000000e+00> : vector<8x32xf32>
    %137 = tpu.matmul %136, %0, %cst_52 {dimension_numbers = #tpu.dot_dimension_numbers<[1], [0], [0], [1], [0, 0, 1, 1], [], []>} : vector<8x16xf32>, vector<16x32xf32>, vector<8x32xf32> -> vector<8x32xf32>
    %138 = vector.broadcast %1 : vector<1x32xf32> to vector<8x32xf32>
    %139 = arith.addf %137, %138 : vector<8x32xf32>
    %cst_53 = arith.constant 0.000000e+00 : f32
    %140 = vector.broadcast %cst_53 : f32 to vector<8x32xf32>
    %141 = arith.maximumf %139, %140 : vector<8x32xf32>
    %cst_54 = arith.constant dense<0.000000e+00> : vector<8x128xf32>
    %142 = tpu.matmul %141, %2, %cst_54 {dimension_numbers = #tpu.dot_dimension_numbers<[1], [0], [0], [1], [0, 0, 1, 1], [], []>} : vector<8x32xf32>, vector<32x128xf32>, vector<8x128xf32> -> vector<8x128xf32>
    %cst_55 = arith.constant dense<0.000000e+00> : vector<8x128xf32>
    %143 = tpu.matmul %126, %3, %cst_55 {dimension_numbers = #tpu.dot_dimension_numbers<[1], [0], [0], [1], [0, 0, 1, 1], [], []>} : vector<8x32xf32>, vector<32x128xf32>, vector<8x128xf32> -> vector<8x128xf32>
    %144 = arith.addf %142, %143 : vector<8x128xf32>
    %145 = vector.broadcast %4 : vector<1x128xf32> to vector<8x128xf32>
    %146 = arith.addf %144, %145 : vector<8x128xf32>
    %147 = vector.extract_strided_slice %146 {offsets = [0, 0], sizes = [8, 32], strides = [1, 1]} : vector<8x128xf32> to vector<8x32xf32>
    %148 = arith.negf %147 : vector<8x32xf32>
    %149 = math.exp %148 : vector<8x32xf32>
    %cst_56 = arith.constant 1.000000e+00 : f32
    %150 = vector.broadcast %cst_56 : f32 to vector<8x32xf32>
    %151 = arith.addf %150, %149 : vector<8x32xf32>
    %152 = arith.divf %150, %151 : vector<8x32xf32>
    %153 = vector.extract_strided_slice %146 {offsets = [0, 32], sizes = [8, 32], strides = [1, 1]} : vector<8x128xf32> to vector<8x32xf32>
    %154 = arith.negf %153 : vector<8x32xf32>
    %155 = math.exp %154 : vector<8x32xf32>
    %cst_57 = arith.constant 1.000000e+00 : f32
    %156 = vector.broadcast %cst_57 : f32 to vector<8x32xf32>
    %157 = arith.addf %156, %155 : vector<8x32xf32>
    %158 = arith.divf %156, %157 : vector<8x32xf32>
    %159 = vector.extract_strided_slice %146 {offsets = [0, 64], sizes = [8, 32], strides = [1, 1]} : vector<8x128xf32> to vector<8x32xf32>
    %160 = vector.extract_strided_slice %146 {offsets = [0, 96], sizes = [8, 32], strides = [1, 1]} : vector<8x128xf32> to vector<8x32xf32>
    %161 = arith.mulf %152, %160 : vector<8x32xf32>
    %162 = arith.addf %159, %161 : vector<8x32xf32>
    %163 = math.tanh %162 : vector<8x32xf32>
    %cst_58 = arith.constant 1.000000e+00 : f32
    %164 = vector.broadcast %cst_58 : f32 to vector<8x32xf32>
    %165 = arith.subf %164, %158 : vector<8x32xf32>
    %166 = arith.mulf %165, %163 : vector<8x32xf32>
    %167 = arith.mulf %158, %126 : vector<8x32xf32>
    %168 = arith.addf %166, %167 : vector<8x32xf32>
    %cst_59 = arith.constant dense<0.000000e+00> : vector<8x8xf32>
    %169 = tpu.matmul %168, %5, %cst_59 {dimension_numbers = #tpu.dot_dimension_numbers<[1], [0], [0], [1], [0, 0, 1, 1], [], []>} : vector<8x32xf32>, vector<32x8xf32>, vector<8x8xf32> -> vector<8x8xf32>
    %170 = vector.broadcast %6 : vector<1x8xf32> to vector<8x8xf32>
    %171 = arith.addf %169, %170 : vector<8x8xf32>
    %172 = arith.index_cast %c3_i32 : i32 to index
    %c0_60 = arith.constant 0 : index
    %c0_61 = arith.constant 0 : index
    %173 = vector.load %arg10[%172, %c0_60, %c0_61] : memref<8x8x8xf32, #tpu.memory_space<vmem>>, vector<1x8x8xf32>
    %174 = vector.shape_cast %173 : vector<1x8x8xf32> to vector<8x8xf32>
    %175 = vector.shape_cast %171 : vector<8x8xf32> to vector<1x8x8xf32>
    tpu.vector_store %arg10[%172, %c0_60, %c0_61], %175 {strides = array<i32>} : memref<8x8x8xf32, #tpu.memory_space<vmem>>, vector<1x8x8xf32>,
    %c4_i32 = arith.constant 4 : i32
    %176 = arith.index_cast %c4_i32 : i32 to index
    %c0_62 = arith.constant 0 : index
    %c0_63 = arith.constant 0 : index
    %177 = vector.load %arg1[%176, %c0_62, %c0_63] : memref<8x8x16xf32, #tpu.memory_space<vmem>>, vector<1x8x16xf32>
    %178 = vector.shape_cast %177 : vector<1x8x16xf32> to vector<8x16xf32>
    %cst_64 = arith.constant dense<0.000000e+00> : vector<8x32xf32>
    %179 = tpu.matmul %178, %0, %cst_64 {dimension_numbers = #tpu.dot_dimension_numbers<[1], [0], [0], [1], [0, 0, 1, 1], [], []>} : vector<8x16xf32>, vector<16x32xf32>, vector<8x32xf32> -> vector<8x32xf32>
    %180 = vector.broadcast %1 : vector<1x32xf32> to vector<8x32xf32>
    %181 = arith.addf %179, %180 : vector<8x32xf32>
    %cst_65 = arith.constant 0.000000e+00 : f32
    %182 = vector.broadcast %cst_65 : f32 to vector<8x32xf32>
    %183 = arith.maximumf %181, %182 : vector<8x32xf32>
    %cst_66 = arith.constant dense<0.000000e+00> : vector<8x128xf32>
    %184 = tpu.matmul %183, %2, %cst_66 {dimension_numbers = #tpu.dot_dimension_numbers<[1], [0], [0], [1], [0, 0, 1, 1], [], []>} : vector<8x32xf32>, vector<32x128xf32>, vector<8x128xf32> -> vector<8x128xf32>
    %cst_67 = arith.constant dense<0.000000e+00> : vector<8x128xf32>
    %185 = tpu.matmul %168, %3, %cst_67 {dimension_numbers = #tpu.dot_dimension_numbers<[1], [0], [0], [1], [0, 0, 1, 1], [], []>} : vector<8x32xf32>, vector<32x128xf32>, vector<8x128xf32> -> vector<8x128xf32>
    %186 = arith.addf %184, %185 : vector<8x128xf32>
    %187 = vector.broadcast %4 : vector<1x128xf32> to vector<8x128xf32>
    %188 = arith.addf %186, %187 : vector<8x128xf32>
    %189 = vector.extract_strided_slice %188 {offsets = [0, 0], sizes = [8, 32], strides = [1, 1]} : vector<8x128xf32> to vector<8x32xf32>
    %190 = arith.negf %189 : vector<8x32xf32>
    %191 = math.exp %190 : vector<8x32xf32>
    %cst_68 = arith.constant 1.000000e+00 : f32
    %192 = vector.broadcast %cst_68 : f32 to vector<8x32xf32>
    %193 = arith.addf %192, %191 : vector<8x32xf32>
    %194 = arith.divf %192, %193 : vector<8x32xf32>
    %195 = vector.extract_strided_slice %188 {offsets = [0, 32], sizes = [8, 32], strides = [1, 1]} : vector<8x128xf32> to vector<8x32xf32>
    %196 = arith.negf %195 : vector<8x32xf32>
    %197 = math.exp %196 : vector<8x32xf32>
    %cst_69 = arith.constant 1.000000e+00 : f32
    %198 = vector.broadcast %cst_69 : f32 to vector<8x32xf32>
    %199 = arith.addf %198, %197 : vector<8x32xf32>
    %200 = arith.divf %198, %199 : vector<8x32xf32>
    %201 = vector.extract_strided_slice %188 {offsets = [0, 64], sizes = [8, 32], strides = [1, 1]} : vector<8x128xf32> to vector<8x32xf32>
    %202 = vector.extract_strided_slice %188 {offsets = [0, 96], sizes = [8, 32], strides = [1, 1]} : vector<8x128xf32> to vector<8x32xf32>
    %203 = arith.mulf %194, %202 : vector<8x32xf32>
    %204 = arith.addf %201, %203 : vector<8x32xf32>
    %205 = math.tanh %204 : vector<8x32xf32>
    %cst_70 = arith.constant 1.000000e+00 : f32
    %206 = vector.broadcast %cst_70 : f32 to vector<8x32xf32>
    %207 = arith.subf %206, %200 : vector<8x32xf32>
    %208 = arith.mulf %207, %205 : vector<8x32xf32>
    %209 = arith.mulf %200, %168 : vector<8x32xf32>
    %210 = arith.addf %208, %209 : vector<8x32xf32>
    %cst_71 = arith.constant dense<0.000000e+00> : vector<8x8xf32>
    %211 = tpu.matmul %210, %5, %cst_71 {dimension_numbers = #tpu.dot_dimension_numbers<[1], [0], [0], [1], [0, 0, 1, 1], [], []>} : vector<8x32xf32>, vector<32x8xf32>, vector<8x8xf32> -> vector<8x8xf32>
    %212 = vector.broadcast %6 : vector<1x8xf32> to vector<8x8xf32>
    %213 = arith.addf %211, %212 : vector<8x8xf32>
    %214 = arith.index_cast %c4_i32 : i32 to index
    %c0_72 = arith.constant 0 : index
    %c0_73 = arith.constant 0 : index
    %215 = vector.load %arg10[%214, %c0_72, %c0_73] : memref<8x8x8xf32, #tpu.memory_space<vmem>>, vector<1x8x8xf32>
    %216 = vector.shape_cast %215 : vector<1x8x8xf32> to vector<8x8xf32>
    %217 = vector.shape_cast %213 : vector<8x8xf32> to vector<1x8x8xf32>
    tpu.vector_store %arg10[%214, %c0_72, %c0_73], %217 {strides = array<i32>} : memref<8x8x8xf32, #tpu.memory_space<vmem>>, vector<1x8x8xf32>,
    %c5_i32 = arith.constant 5 : i32
    %218 = arith.index_cast %c5_i32 : i32 to index
    %c0_74 = arith.constant 0 : index
    %c0_75 = arith.constant 0 : index
    %219 = vector.load %arg1[%218, %c0_74, %c0_75] : memref<8x8x16xf32, #tpu.memory_space<vmem>>, vector<1x8x16xf32>
    %220 = vector.shape_cast %219 : vector<1x8x16xf32> to vector<8x16xf32>
    %cst_76 = arith.constant dense<0.000000e+00> : vector<8x32xf32>
    %221 = tpu.matmul %220, %0, %cst_76 {dimension_numbers = #tpu.dot_dimension_numbers<[1], [0], [0], [1], [0, 0, 1, 1], [], []>} : vector<8x16xf32>, vector<16x32xf32>, vector<8x32xf32> -> vector<8x32xf32>
    %222 = vector.broadcast %1 : vector<1x32xf32> to vector<8x32xf32>
    %223 = arith.addf %221, %222 : vector<8x32xf32>
    %cst_77 = arith.constant 0.000000e+00 : f32
    %224 = vector.broadcast %cst_77 : f32 to vector<8x32xf32>
    %225 = arith.maximumf %223, %224 : vector<8x32xf32>
    %cst_78 = arith.constant dense<0.000000e+00> : vector<8x128xf32>
    %226 = tpu.matmul %225, %2, %cst_78 {dimension_numbers = #tpu.dot_dimension_numbers<[1], [0], [0], [1], [0, 0, 1, 1], [], []>} : vector<8x32xf32>, vector<32x128xf32>, vector<8x128xf32> -> vector<8x128xf32>
    %cst_79 = arith.constant dense<0.000000e+00> : vector<8x128xf32>
    %227 = tpu.matmul %210, %3, %cst_79 {dimension_numbers = #tpu.dot_dimension_numbers<[1], [0], [0], [1], [0, 0, 1, 1], [], []>} : vector<8x32xf32>, vector<32x128xf32>, vector<8x128xf32> -> vector<8x128xf32>
    %228 = arith.addf %226, %227 : vector<8x128xf32>
    %229 = vector.broadcast %4 : vector<1x128xf32> to vector<8x128xf32>
    %230 = arith.addf %228, %229 : vector<8x128xf32>
    %231 = vector.extract_strided_slice %230 {offsets = [0, 0], sizes = [8, 32], strides = [1, 1]} : vector<8x128xf32> to vector<8x32xf32>
    %232 = arith.negf %231 : vector<8x32xf32>
    %233 = math.exp %232 : vector<8x32xf32>
    %cst_80 = arith.constant 1.000000e+00 : f32
    %234 = vector.broadcast %cst_80 : f32 to vector<8x32xf32>
    %235 = arith.addf %234, %233 : vector<8x32xf32>
    %236 = arith.divf %234, %235 : vector<8x32xf32>
    %237 = vector.extract_strided_slice %230 {offsets = [0, 32], sizes = [8, 32], strides = [1, 1]} : vector<8x128xf32> to vector<8x32xf32>
    %238 = arith.negf %237 : vector<8x32xf32>
    %239 = math.exp %238 : vector<8x32xf32>
    %cst_81 = arith.constant 1.000000e+00 : f32
    %240 = vector.broadcast %cst_81 : f32 to vector<8x32xf32>
    %241 = arith.addf %240, %239 : vector<8x32xf32>
    %242 = arith.divf %240, %241 : vector<8x32xf32>
    %243 = vector.extract_strided_slice %230 {offsets = [0, 64], sizes = [8, 32], strides = [1, 1]} : vector<8x128xf32> to vector<8x32xf32>
    %244 = vector.extract_strided_slice %230 {offsets = [0, 96], sizes = [8, 32], strides = [1, 1]} : vector<8x128xf32> to vector<8x32xf32>
    %245 = arith.mulf %236, %244 : vector<8x32xf32>
    %246 = arith.addf %243, %245 : vector<8x32xf32>
    %247 = math.tanh %246 : vector<8x32xf32>
    %cst_82 = arith.constant 1.000000e+00 : f32
    %248 = vector.broadcast %cst_82 : f32 to vector<8x32xf32>
    %249 = arith.subf %248, %242 : vector<8x32xf32>
    %250 = arith.mulf %249, %247 : vector<8x32xf32>
    %251 = arith.mulf %242, %210 : vector<8x32xf32>
    %252 = arith.addf %250, %251 : vector<8x32xf32>
    %cst_83 = arith.constant dense<0.000000e+00> : vector<8x8xf32>
    %253 = tpu.matmul %252, %5, %cst_83 {dimension_numbers = #tpu.dot_dimension_numbers<[1], [0], [0], [1], [0, 0, 1, 1], [], []>} : vector<8x32xf32>, vector<32x8xf32>, vector<8x8xf32> -> vector<8x8xf32>
    %254 = vector.broadcast %6 : vector<1x8xf32> to vector<8x8xf32>
    %255 = arith.addf %253, %254 : vector<8x8xf32>
    %256 = arith.index_cast %c5_i32 : i32 to index
    %c0_84 = arith.constant 0 : index
    %c0_85 = arith.constant 0 : index
    %257 = vector.load %arg10[%256, %c0_84, %c0_85] : memref<8x8x8xf32, #tpu.memory_space<vmem>>, vector<1x8x8xf32>
    %258 = vector.shape_cast %257 : vector<1x8x8xf32> to vector<8x8xf32>
    %259 = vector.shape_cast %255 : vector<8x8xf32> to vector<1x8x8xf32>
    tpu.vector_store %arg10[%256, %c0_84, %c0_85], %259 {strides = array<i32>} : memref<8x8x8xf32, #tpu.memory_space<vmem>>, vector<1x8x8xf32>,
    %c6_i32 = arith.constant 6 : i32
    %260 = arith.index_cast %c6_i32 : i32 to index
    %c0_86 = arith.constant 0 : index
    %c0_87 = arith.constant 0 : index
    %261 = vector.load %arg1[%260, %c0_86, %c0_87] : memref<8x8x16xf32, #tpu.memory_space<vmem>>, vector<1x8x16xf32>
    %262 = vector.shape_cast %261 : vector<1x8x16xf32> to vector<8x16xf32>
    %cst_88 = arith.constant dense<0.000000e+00> : vector<8x32xf32>
    %263 = tpu.matmul %262, %0, %cst_88 {dimension_numbers = #tpu.dot_dimension_numbers<[1], [0], [0], [1], [0, 0, 1, 1], [], []>} : vector<8x16xf32>, vector<16x32xf32>, vector<8x32xf32> -> vector<8x32xf32>
    %264 = vector.broadcast %1 : vector<1x32xf32> to vector<8x32xf32>
    %265 = arith.addf %263, %264 : vector<8x32xf32>
    %cst_89 = arith.constant 0.000000e+00 : f32
    %266 = vector.broadcast %cst_89 : f32 to vector<8x32xf32>
    %267 = arith.maximumf %265, %266 : vector<8x32xf32>
    %cst_90 = arith.constant dense<0.000000e+00> : vector<8x128xf32>
    %268 = tpu.matmul %267, %2, %cst_90 {dimension_numbers = #tpu.dot_dimension_numbers<[1], [0], [0], [1], [0, 0, 1, 1], [], []>} : vector<8x32xf32>, vector<32x128xf32>, vector<8x128xf32> -> vector<8x128xf32>
    %cst_91 = arith.constant dense<0.000000e+00> : vector<8x128xf32>
    %269 = tpu.matmul %252, %3, %cst_91 {dimension_numbers = #tpu.dot_dimension_numbers<[1], [0], [0], [1], [0, 0, 1, 1], [], []>} : vector<8x32xf32>, vector<32x128xf32>, vector<8x128xf32> -> vector<8x128xf32>
    %270 = arith.addf %268, %269 : vector<8x128xf32>
    %271 = vector.broadcast %4 : vector<1x128xf32> to vector<8x128xf32>
    %272 = arith.addf %270, %271 : vector<8x128xf32>
    %273 = vector.extract_strided_slice %272 {offsets = [0, 0], sizes = [8, 32], strides = [1, 1]} : vector<8x128xf32> to vector<8x32xf32>
    %274 = arith.negf %273 : vector<8x32xf32>
    %275 = math.exp %274 : vector<8x32xf32>
    %cst_92 = arith.constant 1.000000e+00 : f32
    %276 = vector.broadcast %cst_92 : f32 to vector<8x32xf32>
    %277 = arith.addf %276, %275 : vector<8x32xf32>
    %278 = arith.divf %276, %277 : vector<8x32xf32>
    %279 = vector.extract_strided_slice %272 {offsets = [0, 32], sizes = [8, 32], strides = [1, 1]} : vector<8x128xf32> to vector<8x32xf32>
    %280 = arith.negf %279 : vector<8x32xf32>
    %281 = math.exp %280 : vector<8x32xf32>
    %cst_93 = arith.constant 1.000000e+00 : f32
    %282 = vector.broadcast %cst_93 : f32 to vector<8x32xf32>
    %283 = arith.addf %282, %281 : vector<8x32xf32>
    %284 = arith.divf %282, %283 : vector<8x32xf32>
    %285 = vector.extract_strided_slice %272 {offsets = [0, 64], sizes = [8, 32], strides = [1, 1]} : vector<8x128xf32> to vector<8x32xf32>
    %286 = vector.extract_strided_slice %272 {offsets = [0, 96], sizes = [8, 32], strides = [1, 1]} : vector<8x128xf32> to vector<8x32xf32>
    %287 = arith.mulf %278, %286 : vector<8x32xf32>
    %288 = arith.addf %285, %287 : vector<8x32xf32>
    %289 = math.tanh %288 : vector<8x32xf32>
    %cst_94 = arith.constant 1.000000e+00 : f32
    %290 = vector.broadcast %cst_94 : f32 to vector<8x32xf32>
    %291 = arith.subf %290, %284 : vector<8x32xf32>
    %292 = arith.mulf %291, %289 : vector<8x32xf32>
    %293 = arith.mulf %284, %252 : vector<8x32xf32>
    %294 = arith.addf %292, %293 : vector<8x32xf32>
    %cst_95 = arith.constant dense<0.000000e+00> : vector<8x8xf32>
    %295 = tpu.matmul %294, %5, %cst_95 {dimension_numbers = #tpu.dot_dimension_numbers<[1], [0], [0], [1], [0, 0, 1, 1], [], []>} : vector<8x32xf32>, vector<32x8xf32>, vector<8x8xf32> -> vector<8x8xf32>
    %296 = vector.broadcast %6 : vector<1x8xf32> to vector<8x8xf32>
    %297 = arith.addf %295, %296 : vector<8x8xf32>
    %298 = arith.index_cast %c6_i32 : i32 to index
    %c0_96 = arith.constant 0 : index
    %c0_97 = arith.constant 0 : index
    %299 = vector.load %arg10[%298, %c0_96, %c0_97] : memref<8x8x8xf32, #tpu.memory_space<vmem>>, vector<1x8x8xf32>
    %300 = vector.shape_cast %299 : vector<1x8x8xf32> to vector<8x8xf32>
    %301 = vector.shape_cast %297 : vector<8x8xf32> to vector<1x8x8xf32>
    tpu.vector_store %arg10[%298, %c0_96, %c0_97], %301 {strides = array<i32>} : memref<8x8x8xf32, #tpu.memory_space<vmem>>, vector<1x8x8xf32>,
    %c7_i32 = arith.constant 7 : i32
    %302 = arith.index_cast %c7_i32 : i32 to index
    %c0_98 = arith.constant 0 : index
    %c0_99 = arith.constant 0 : index
    %303 = vector.load %arg1[%302, %c0_98, %c0_99] : memref<8x8x16xf32, #tpu.memory_space<vmem>>, vector<1x8x16xf32>
    %304 = vector.shape_cast %303 : vector<1x8x16xf32> to vector<8x16xf32>
    %cst_100 = arith.constant dense<0.000000e+00> : vector<8x32xf32>
    %305 = tpu.matmul %304, %0, %cst_100 {dimension_numbers = #tpu.dot_dimension_numbers<[1], [0], [0], [1], [0, 0, 1, 1], [], []>} : vector<8x16xf32>, vector<16x32xf32>, vector<8x32xf32> -> vector<8x32xf32>
    %306 = vector.broadcast %1 : vector<1x32xf32> to vector<8x32xf32>
    %307 = arith.addf %305, %306 : vector<8x32xf32>
    %cst_101 = arith.constant 0.000000e+00 : f32
    %308 = vector.broadcast %cst_101 : f32 to vector<8x32xf32>
    %309 = arith.maximumf %307, %308 : vector<8x32xf32>
    %cst_102 = arith.constant dense<0.000000e+00> : vector<8x128xf32>
    %310 = tpu.matmul %309, %2, %cst_102 {dimension_numbers = #tpu.dot_dimension_numbers<[1], [0], [0], [1], [0, 0, 1, 1], [], []>} : vector<8x32xf32>, vector<32x128xf32>, vector<8x128xf32> -> vector<8x128xf32>
    %cst_103 = arith.constant dense<0.000000e+00> : vector<8x128xf32>
    %311 = tpu.matmul %294, %3, %cst_103 {dimension_numbers = #tpu.dot_dimension_numbers<[1], [0], [0], [1], [0, 0, 1, 1], [], []>} : vector<8x32xf32>, vector<32x128xf32>, vector<8x128xf32> -> vector<8x128xf32>
    %312 = arith.addf %310, %311 : vector<8x128xf32>
    %313 = vector.broadcast %4 : vector<1x128xf32> to vector<8x128xf32>
    %314 = arith.addf %312, %313 : vector<8x128xf32>
    %315 = vector.extract_strided_slice %314 {offsets = [0, 0], sizes = [8, 32], strides = [1, 1]} : vector<8x128xf32> to vector<8x32xf32>
    %316 = arith.negf %315 : vector<8x32xf32>
    %317 = math.exp %316 : vector<8x32xf32>
    %cst_104 = arith.constant 1.000000e+00 : f32
    %318 = vector.broadcast %cst_104 : f32 to vector<8x32xf32>
    %319 = arith.addf %318, %317 : vector<8x32xf32>
    %320 = arith.divf %318, %319 : vector<8x32xf32>
    %321 = vector.extract_strided_slice %314 {offsets = [0, 32], sizes = [8, 32], strides = [1, 1]} : vector<8x128xf32> to vector<8x32xf32>
    %322 = arith.negf %321 : vector<8x32xf32>
    %323 = math.exp %322 : vector<8x32xf32>
    %cst_105 = arith.constant 1.000000e+00 : f32
    %324 = vector.broadcast %cst_105 : f32 to vector<8x32xf32>
    %325 = arith.addf %324, %323 : vector<8x32xf32>
    %326 = arith.divf %324, %325 : vector<8x32xf32>
    %327 = vector.extract_strided_slice %314 {offsets = [0, 64], sizes = [8, 32], strides = [1, 1]} : vector<8x128xf32> to vector<8x32xf32>
    %328 = vector.extract_strided_slice %314 {offsets = [0, 96], sizes = [8, 32], strides = [1, 1]} : vector<8x128xf32> to vector<8x32xf32>
    %329 = arith.mulf %320, %328 : vector<8x32xf32>
    %330 = arith.addf %327, %329 : vector<8x32xf32>
    %331 = math.tanh %330 : vector<8x32xf32>
    %cst_106 = arith.constant 1.000000e+00 : f32
    %332 = vector.broadcast %cst_106 : f32 to vector<8x32xf32>
    %333 = arith.subf %332, %326 : vector<8x32xf32>
    %334 = arith.mulf %333, %331 : vector<8x32xf32>
    %335 = arith.mulf %326, %294 : vector<8x32xf32>
    %336 = arith.addf %334, %335 : vector<8x32xf32>
    %cst_107 = arith.constant dense<0.000000e+00> : vector<8x8xf32>
    %337 = tpu.matmul %336, %5, %cst_107 {dimension_numbers = #tpu.dot_dimension_numbers<[1], [0], [0], [1], [0, 0, 1, 1], [], []>} : vector<8x32xf32>, vector<32x8xf32>, vector<8x8xf32> -> vector<8x8xf32>
    %338 = vector.broadcast %6 : vector<1x8xf32> to vector<8x8xf32>
    %339 = arith.addf %337, %338 : vector<8x8xf32>
    %340 = arith.index_cast %c7_i32 : i32 to index
    %c0_108 = arith.constant 0 : index
    %c0_109 = arith.constant 0 : index
    %341 = vector.load %arg10[%340, %c0_108, %c0_109] : memref<8x8x8xf32, #tpu.memory_space<vmem>>, vector<1x8x8xf32>
    %342 = vector.shape_cast %341 : vector<1x8x8xf32> to vector<8x8xf32>
    %343 = vector.shape_cast %339 : vector<8x8xf32> to vector<1x8x8xf32>
    tpu.vector_store %arg10[%340, %c0_108, %c0_109], %343 {strides = array<i32>} : memref<8x8x8xf32, #tpu.memory_space<vmem>>, vector<1x8x8xf32>,
    %c8_i32 = arith.constant 8 : i32
    %c0_110 = arith.constant 0 : index
    %c0_111 = arith.constant 0 : index
    %344 = vector.load %arg11[%c0_110, %c0_111] : memref<8x32xf32, #tpu.memory_space<vmem>>, vector<8x32xf32>
    tpu.vector_store %arg11[%c0_110, %c0_111], %336 {strides = array<i32>} : memref<8x32xf32, #tpu.memory_space<vmem>>, vector<8x32xf32>,
    return
  }
  func.func @transform_0(%arg0: i32) -> (i32, i32, i32) {
    %c0_i32 = arith.constant 0 : i32
    %c0_i32_0 = arith.constant 0 : i32
    %c0_i32_1 = arith.constant 0 : i32
    %c0_i32_2 = arith.constant 0 : i32
    return %c0_i32, %c0_i32_0, %c0_i32_1 : i32, i32, i32
  }
  func.func @transform_1(%arg0: i32) -> (i32, i32) {
    %c0_i32 = arith.constant 0 : i32
    %c0_i32_0 = arith.constant 0 : i32
    %c0_i32_1 = arith.constant 0 : i32
    return %c0_i32, %c0_i32_0 : i32, i32
  }
  func.func @transform_2(%arg0: i32) -> (i32, i32) {
    %c0_i32 = arith.constant 0 : i32
    %c0_i32_0 = arith.constant 0 : i32
    %c0_i32_1 = arith.constant 0 : i32
    return %c0_i32, %c0_i32_0 : i32, i32
  }
  func.func @transform_3(%arg0: i32) -> (i32, i32) {
    %c0_i32 = arith.constant 0 : i32
    %c0_i32_0 = arith.constant 0 : i32
    %c0_i32_1 = arith.constant 0 : i32
    return %c0_i32, %c0_i32_0 : i32, i32
  }
  func.func @transform_4(%arg0: i32) -> (i32, i32) {
    %c0_i32 = arith.constant 0 : i32
    %c0_i32_0 = arith.constant 0 : i32
    %c0_i32_1 = arith.constant 0 : i32
    return %c0_i32, %c0_i32_0 : i32, i32
  }
  func.func @transform_5(%arg0: i32) -> (i32, i32) {
    %c0_i32 = arith.constant 0 : i32
    %c0_i32_0 = arith.constant 0 : i32
    %c0_i32_1 = arith.constant 0 : i32
    return %c0_i32, %c0_i32_0 : i32, i32
  }
  func.func @transform_6(%arg0: i32) -> (i32, i32) {
    %c0_i32 = arith.constant 0 : i32
    %c0_i32_0 = arith.constant 0 : i32
    %c0_i32_1 = arith.constant 0 : i32
    return %c0_i32, %c0_i32_0 : i32, i32
  }
  func.func @transform_7(%arg0: i32) -> (i32, i32) {
    %c0_i32 = arith.constant 0 : i32
    %c0_i32_0 = arith.constant 0 : i32
    %c0_i32_1 = arith.constant 0 : i32
    return %c0_i32, %c0_i32_0 : i32, i32
  }
  func.func @transform_8(%arg0: i32) -> (i32, i32) {
    %c0_i32 = arith.constant 0 : i32
    %c0_i32_0 = arith.constant 0 : i32
    %c0_i32_1 = arith.constant 0 : i32
    return %c0_i32, %c0_i32_0 : i32, i32
  }
  func.func @transform_9(%arg0: i32) -> (i32, i32, i32) {
    %c0_i32 = arith.constant 0 : i32
    %c0_i32_0 = arith.constant 0 : i32
    %c0_i32_1 = arith.constant 0 : i32
    %c0_i32_2 = arith.constant 0 : i32
    return %c0_i32, %c0_i32_0, %c0_i32_1 : i32, i32, i32
  }
  func.func @transform_10(%arg0: i32) -> (i32, i32) {
    %c0_i32 = arith.constant 0 : i32
    %c0_i32_0 = arith.constant 0 : i32
    %c0_i32_1 = arith.constant 0 : i32
    return %c0_i32, %c0_i32_0 : i32, i32
  }
}

</mosaic_0001>

<llo_original>
// kernel: rnn_model_forward.1
$region0: #{rnn_model_forward.1}
  #allocation0 [shape = 'u32[]', space=smem, size = 0x4, offset = 0x4, fixed_abs, tag = 'smem constant byte address 0x4 - core index']
  #allocation1 [shape = 'u32[72,128]{1,0:T(1,128)}', space=vmem, size = 0x9000, scoped, tag = 'internal scratch']
  %s0 = inlined_call_operand.hbm [shape: f32[8,8,16], index: 0, kind: input, shape index: {}]
  %s1 = inlined_call_operand.vmem [shape: f32[8,32], index: 1, kind: input, shape index: {}]
  %s2 = inlined_call_operand.hbm [shape: f32[16,32], index: 2, kind: input, shape index: {}]
  %s3 = inlined_call_operand.hbm [shape: f32[1,32], index: 3, kind: input, shape index: {}]
  %s4 = inlined_call_operand.vmem [shape: f32[32,128], index: 4, kind: input, shape index: {}]
  %s5 = inlined_call_operand.vmem [shape: f32[32,128], index: 5, kind: input, shape index: {}]
  %s6 = inlined_call_operand.hbm [shape: f32[1,128], index: 6, kind: input, shape index: {}]
  %s7 = inlined_call_operand.vmem [shape: f32[32,8], index: 7, kind: input, shape index: {}]
  %s8 = inlined_call_operand.hbm [shape: f32[1,8], index: 8, kind: input, shape index: {}]
  %s9 = inlined_call_operand.hbm [shape: f32[8,8,8], index: 9, kind: output, shape index: {0}]
  %s10 = inlined_call_operand.hbm [shape: f32[8,32], index: 10, kind: output, shape index: {1}]
  %11 = xla_tuple %s9, %s10
  %s12 = sld [smem:[#allocation0]]
  $region74: #{rnn_model_forward.1} parent=0
    _
  %s14 = ssub.s32 1, %s12
  %s15 = scalar_select 0, %s14, %s12
  $region1: #{rnn_model_forward.1} parent=0
    #allocation2 [shape = 'u8[32768]{0}', space=vmem, size = 0x8000, scoped, tag = 'input window, operand 0, single buffered']
    #allocation3 [shape = 's32[1]{0}', space=sflag, size = 0x4, scoped, tag = 'scoped memory for rnn_model_forward.1']
    #allocation4 [shape = 's32[1]{0}', space=sflag, size = 0x4, scoped, tag = 'scoped memory for rnn_model_forward.1']
    #allocation5 [shape = 'u8[8192]{0}', space=vmem, size = 0x2000, scoped, tag = 'input window, operand 2, single buffered']
    #allocation6 [shape = 's32[1]{0}', space=sflag, size = 0x4, scoped, tag = 'scoped memory for rnn_model_forward.1']
    #allocation7 [shape = 'u8[512]{0}', space=vmem, size = 0x400, scoped, tag = 'input window, operand 3, single buffered']
    #allocation8 [shape = 'u8[512]{0}', space=vmem, size = 0x400, scoped, tag = 'input window, operand 6, single buffered']
    #allocation9 [shape = 's32[1]{0}', space=sflag, size = 0x4, scoped, tag = 'scoped memory for rnn_model_forward.1']
    #allocation10 [shape = 'u8[512]{0}', space=vmem, size = 0x400, scoped, tag = 'input window, operand 8, single buffered']
    #allocation11 [shape = 'u8[32768]{0}', space=vmem, size = 0x8000, scoped, tag = 'output window, operand 0, single buffered']
    #allocation12 [shape = 'u8[4096]{0}', space=vmem, size = 0x1000, scoped, tag = 'output window, operand 1, single buffered']
    #allocation13 [shape = 's32[1]{0}', space=sflag, size = 0x4, scoped, tag = 'scoped memory for rnn_model_forward.1']
    %16 = vsyncpa [#allocation3], 0
    %17 = vsyncpa [#allocation6], 0
    %18 = vsyncpa [#allocation9], 0
    %19 = vsyncpa [#allocation4], 0
    %20 = vsyncpa [#allocation13], 0
    // Predicated region
    $region2: #{rnn_model_forward.1} parent=1 // pred_check
      _
    $region3: #{rnn_model_forward.1} parent=1 // pred_check_branch
      %22 = sbr.rel (0) target = $region5
    $region4: #{rnn_model_forward.1} parent=1 // pred_region
      %24 = vsyncadd [#allocation3], 0
      %s25 = sshll.u32 %s0, 4
      %s26 = int_to_ptr.hbm [resolvable:$true] %s25
      %s27 = sshll.u32 [#allocation2], 4
      %s28 = int_to_ptr.vmem [resolvable:$true] %s27
      %33 = dma.hbm_to_vmem [thread:$0]  %s26, 1024, %s28, [#allocation3], 128, 128, 8
    $region5: #{rnn_model_forward.1} parent=1 // pred_fallthru
      _
    // Predicated region
    $region6: #{rnn_model_forward.1} parent=1 // pred_check
      _
    $region7: #{rnn_model_forward.1} parent=1 // pred_check_branch
      %35 = sbr.rel (0) target = $region9
    $region8: #{rnn_model_forward.1} parent=1 // pred_region
      _
    $region9: #{rnn_model_forward.1} parent=1 // pred_fallthru
      _
    // Predicated region
    $region10: #{rnn_model_forward.1} parent=1 // pred_check
      _
    $region11: #{rnn_model_forward.1} parent=1 // pred_check_branch
      %37 = sbr.rel (0) target = $region13
    $region12: #{rnn_model_forward.1} parent=1 // pred_region
      %39 = vsyncadd [#allocation6], 0
      %s40 = sshll.u32 %s2, 4
      %s41 = int_to_ptr.hbm [resolvable:$true] %s40
      %s42 = sshll.u32 [#allocation5], 4
      %s43 = int_to_ptr.vmem [resolvable:$true] %s42
      %48 = dma.hbm_to_vmem [thread:$0]  %s41, 256, %s43, [#allocation6], 128, 128, 8
    $region13: #{rnn_model_forward.1} parent=1 // pred_fallthru
      _
    // Predicated region
    $region14: #{rnn_model_forward.1} parent=1 // pred_check
      _
    $region15: #{rnn_model_forward.1} parent=1 // pred_check_branch
      %50 = sbr.rel (0) target = $region17
    $region16: #{rnn_model_forward.1} parent=1 // pred_region
      %52 = vsyncadd [#allocation6], 0
      %s54 = sshll.u32 %s3, 4
      %s55 = int_to_ptr.hbm [resolvable:$true] %s54
      %s56 = sshll.u32 [#allocation7], 4
      %s57 = int_to_ptr.vmem [resolvable:$true] %s56
      %59 = dma.hbm_to_vmem [thread:$0]  %s55, 16, %s57, [#allocation6]
    $region17: #{rnn_model_forward.1} parent=1 // pred_fallthru
      _
    // Predicated region
    $region18: #{rnn_model_forward.1} parent=1 // pred_check
      _
    $region19: #{rnn_model_forward.1} parent=1 // pred_check_branch
      %61 = sbr.rel (0) target = $region21
    $region20: #{rnn_model_forward.1} parent=1 // pred_region
      _
    $region21: #{rnn_model_forward.1} parent=1 // pred_fallthru
      _
    // Predicated region
    $region22: #{rnn_model_forward.1} parent=1 // pred_check
      _
    $region23: #{rnn_model_forward.1} parent=1 // pred_check_branch
      %63 = sbr.rel (0) target = $region25
    $region24: #{rnn_model_forward.1} parent=1 // pred_region
      _
    $region25: #{rnn_model_forward.1} parent=1 // pred_fallthru
      _
    // Predicated region
    $region26: #{rnn_model_forward.1} parent=1 // pred_check
      _
    $region27: #{rnn_model_forward.1} parent=1 // pred_check_branch
      %65 = sbr.rel (0) target = $region29
    $region28: #{rnn_model_forward.1} parent=1 // pred_region
      %67 = vsyncadd [#allocation9], 0
      %s69 = sshll.u32 %s6, 4
      %s70 = int_to_ptr.hbm [resolvable:$true] %s69
      %s71 = sshll.u32 [#allocation8], 4
      %s72 = int_to_ptr.vmem [resolvable:$true] %s71
      %74 = dma.hbm_to_vmem [thread:$0]  %s70, 16, %s72, [#allocation9]
    $region29: #{rnn_model_forward.1} parent=1 // pred_fallthru
      _
    // Predicated region
    $region30: #{rnn_model_forward.1} parent=1 // pred_check
      _
    $region31: #{rnn_model_forward.1} parent=1 // pred_check_branch
      %76 = sbr.rel (0) target = $region33
    $region32: #{rnn_model_forward.1} parent=1 // pred_region
      _
    $region33: #{rnn_model_forward.1} parent=1 // pred_fallthru
      _
    // Predicated region
    $region34: #{rnn_model_forward.1} parent=1 // pred_check
      _
    $region35: #{rnn_model_forward.1} parent=1 // pred_check_branch
      %78 = sbr.rel (0) target = $region37
    $region36: #{rnn_model_forward.1} parent=1 // pred_region
      %80 = vsyncadd [#allocation9], 0
      %s82 = sshll.u32 %s8, 4
      %s83 = int_to_ptr.hbm [resolvable:$true] %s82
      %s84 = sshll.u32 [#allocation10], 4
      %s85 = int_to_ptr.vmem [resolvable:$true] %s84
      %87 = dma.hbm_to_vmem [thread:$0]  %s83, 16, %s85, [#allocation9]
    $region37: #{rnn_model_forward.1} parent=1 // pred_fallthru
      _
    // Predicated region
    $region38: #{rnn_model_forward.1} parent=1 // pred_check
      _
    $region39: #{rnn_model_forward.1} parent=1 // pred_check_branch
      %89 = sbr.rel (0) target = $region41
    $region40: #{rnn_model_forward.1} parent=1 // pred_region
      %91 = dma.done [#allocation3], 1024
    $region41: #{rnn_model_forward.1} parent=1 // pred_fallthru
      _
    // Predicated region
    $region42: #{rnn_model_forward.1} parent=1 // pred_check
      _
    $region43: #{rnn_model_forward.1} parent=1 // pred_check_branch
      %93 = sbr.rel (0) target = $region45
    $region44: #{rnn_model_forward.1} parent=1 // pred_region
      %95 = dma.done [#allocation6], 256
    $region45: #{rnn_model_forward.1} parent=1 // pred_fallthru
      _
    // Predicated region
    $region46: #{rnn_model_forward.1} parent=1 // pred_check
      _
    $region47: #{rnn_model_forward.1} parent=1 // pred_check_branch
      %97 = sbr.rel (0) target = $region49
    $region48: #{rnn_model_forward.1} parent=1 // pred_region
      %99 = dma.done [#allocation6], 16
    $region49: #{rnn_model_forward.1} parent=1 // pred_fallthru
      _
    // Predicated region
    $region50: #{rnn_model_forward.1} parent=1 // pred_check
      _
    $region51: #{rnn_model_forward.1} parent=1 // pred_check_branch
      %101 = sbr.rel (0) target = $region53
    $region52: #{rnn_model_forward.1} parent=1 // pred_region
      %103 = dma.done [#allocation9], 16
    $region53: #{rnn_model_forward.1} parent=1 // pred_fallthru
      _
    // Predicated region
    $region54: #{rnn_model_forward.1} parent=1 // pred_check
      _
    $region55: #{rnn_model_forward.1} parent=1 // pred_check_branch
      %105 = sbr.rel (0) target = $region57
    $region56: #{rnn_model_forward.1} parent=1 // pred_region
      %107 = dma.done [#allocation9], 16
    $region57: #{rnn_model_forward.1} parent=1 // pred_fallthru
      _
    %v108 = vld [vmem:[#allocation5] sm:$0xff]
    %v109 = vld [vmem:[#allocation5 + $0x8] sm:$0xff]
    %v110 = vld [vmem:[#allocation7] sm:$0x1]
    %v111 = vld [vmem:[%s4] sm:$0xff]
    %v112 = vld [vmem:[%s4 + $0x8] sm:$0xff]
    %v113 = vld [vmem:[%s4 + $0x10] sm:$0xff]
    %v114 = vld [vmem:[%s4 + $0x18] sm:$0xff]
    %v115 = vld [vmem:[%s5] sm:$0xff]
    %v116 = vld [vmem:[%s5 + $0x8] sm:$0xff]
    %v117 = vld [vmem:[%s5 + $0x10] sm:$0xff]
    %v118 = vld [vmem:[%s5 + $0x18] sm:$0xff]
    %v119 = vld [vmem:[#allocation8] sm:$0x1]
    %v120 = vld [vmem:[%s7] sm:$0xff]
    %v121 = vld [vmem:[%s7 + $0x8] sm:$0xff]
    %v122 = vld [vmem:[%s7 + $0x10] sm:$0xff]
    %v123 = vld [vmem:[%s7 + $0x18] sm:$0xff]
    %v124 = vld [vmem:[#allocation10] sm:$0x1]
    %v125 = vld [vmem:[%s1] sm:$0xff]
    %v126 = vld [vmem:[#allocation2] sm:$0xff]
    %v128 = vperm.slane %v110, 0
    %vm130 = vcmask 130048
    %v132 = vsel %vm130, %v126, 0
    %134 = vmatpush.msra.mxu0 0.0
    %135 = vmatpush.msra.mxu0 0.0
    %136 = vmatpush.msra.mxu0 0.0
    %137 = vmatpush.msra.mxu0 0.0
    %138 = vmatpush.msra.mxu0 0.0
    %139 = vmatpush.msra.mxu0 0.0
    %140 = vmatpush.msra.mxu0 0.0
    %141 = vmatpush.msra.mxu0 0.0
    %142 = vmatpush.msra.mxu0 0.0
    %143 = vmatpush.msra.mxu0 0.0
    %144 = vmatpush.msra.mxu0 0.0
    %145 = vmatpush.msra.mxu0 0.0
    %146 = vmatpush.msra.mxu0 0.0
    %147 = vmatpush.msra.mxu0 0.0
    %148 = vmatpush.msra.mxu0 %v109
    %149 = vmatpush.msra.mxu0 %v108
    %150 = vmatmul.f32.gmra.mxu0 %v132
    %v151 = vpop.f32.mrf.mxu0
    %v152 = vadd.f32 %v128, %v151
    %153 = vdwg.mxu0
    %v154 = vmax.f32 %v152, 0.0
    %vm155 = vcmask 261120
    %v157 = vsel %vm155, %v125, 0
    %159 = vmatpush.msra.mxu0 0.0
    %160 = vmatpush.msra.mxu0 0.0
    %161 = vmatpush.msra.mxu0 0.0
    %162 = vmatpush.msra.mxu0 0.0
    %163 = vmatpush.msra.mxu0 0.0
    %164 = vmatpush.msra.mxu0 0.0
    %165 = vmatpush.msra.mxu0 0.0
    %166 = vmatpush.msra.mxu0 0.0
    %167 = vmatpush.msra.mxu0 0.0
    %168 = vmatpush.msra.mxu0 0.0
    %169 = vmatpush.msra.mxu0 0.0
    %170 = vmatpush.msra.mxu0 0.0
    %171 = vmatpush.msra.mxu0 %v118
    %172 = vmatpush.msra.mxu0 %v117
    %173 = vmatpush.msra.mxu0 %v116
    %174 = vmatpush.msra.mxu0 %v115
    %175 = vmatmul.f32.gmra.mxu0 %v157
    %v176 = vpop.f32.mrf.mxu0
    %v177 = vadd.f32 0.0, %v176
    %178 = vdwg.mxu0
    %v180 = vsel %vm155, %v154, 0
    %182 = vmatpush.msra.mxu0 0.0
    %183 = vmatpush.msra.mxu0 0.0
    %184 = vmatpush.msra.mxu0 0.0
    %185 = vmatpush.msra.mxu0 0.0
    %186 = vmatpush.msra.mxu0 0.0
    %187 = vmatpush.msra.mxu0 0.0
    %188 = vmatpush.msra.mxu0 0.0
    %189 = vmatpush.msra.mxu0 0.0
    %190 = vmatpush.msra.mxu0 0.0
    %191 = vmatpush.msra.mxu0 0.0
    %192 = vmatpush.msra.mxu0 0.0
    %193 = vmatpush.msra.mxu0 0.0
    %194 = vmatpush.msra.mxu0 %v114
    %195 = vmatpush.msra.mxu0 %v113
    %196 = vmatpush.msra.mxu0 %v112
    %197 = vmatpush.msra.mxu0 %v111
    %198 = vmatmul.f32.gmra.mxu0 %v180
    %v199 = vpop.f32.mrf.mxu0
    %v200 = vadd.f32 %v177, %v199
    %201 = vdwg.mxu0
    %v203 = vperm.slane %v119, 0
    %v205 = vadd.f32 %v200, %v203
    %v206 = vxor.u32 %v205, 2147483648
    %v207 = vmul.f32 %v206, 1.442695
    %v208 = vpow.pop %v207
    %v209 = vadd.f32 %v208, 1.0
    %v210 = vrcp.pop %v209
    %v211 = vmul.f32 %v209, %v210
    %v212 = vsub.f32 1.0, %v211
    %v213 = vmul.f32 %v210, %v212
    %v214 = vadd.f32 %v210, %v213
    %vm215 = vweird.f32 %v209
    %vm216 = vweird.f32 %v210
    %vm217 = vmor %vm215, %vm216
    %v218 = vsel %vm217, %v210, %v214
    %v219 = vand.u32 2147483647, %v209
    %vm220 = vcmp.eq.f32.partialorder %v219, 8.507059e+37
    %v221 = vand.u32 %v209, 2147483648
    %v222 = vor.u32 1.1754944e-38, %v221
    %v223 = vsel %vm220, %v222, %v218
    %v224 = vmul.f32 1.0, %v223
    %226 = vrot.lane.b32.xlu0 %v205, 32
    %v227 = vpop.permute.xlu0 %226
    %v229 = vmul.f32 %v224, %v227
    %231 = vrot.lane.b32.xlu0 %v229, 64
    %v232 = vpop.permute.xlu0 %231
    %v234 = vadd.f32 %v205, %v232
    %v235 = vtanh.pop %v234
    %v236 = vsub.f32 1.0, %v224
    %238 = vrot.lane.b32.xlu0 %v235, 96
    %v239 = vpop.permute.xlu0 %238
    %v241 = vmul.f32 %v236, %v239
    %242 = vrot.lane.b32.xlu0 %v125, 32
    %v243 = vpop.permute.xlu0 %242
    %v245 = vmul.f32 %v224, %v243
    %v246 = vadd.f32 %v241, %v245
    %v248 = vperm.slane %v124, 0
    %251 = vrot.lane.b32.xlu0 %v246, 96
    %v252 = vpop.permute.xlu0 %251
    %v253 = vsel %vm155, %v252, 0
    %255 = vmatpush.msra.mxu0 0.0
    %256 = vmatpush.msra.mxu0 0.0
    %257 = vmatpush.msra.mxu0 0.0
    %258 = vmatpush.msra.mxu0 0.0
    %259 = vmatpush.msra.mxu0 0.0
    %260 = vmatpush.msra.mxu0 0.0
    %261 = vmatpush.msra.mxu0 0.0
    %262 = vmatpush.msra.mxu0 0.0
    %263 = vmatpush.msra.mxu0 0.0
    %264 = vmatpush.msra.mxu0 0.0
    %265 = vmatpush.msra.mxu0 0.0
    %266 = vmatpush.msra.mxu0 0.0
    %267 = vmatpush.msra.mxu0 %v123
    %268 = vmatpush.msra.mxu0 %v122
    %269 = vmatpush.msra.mxu0 %v121
    %270 = vmatpush.msra.mxu0 %v120
    %271 = vmatmul.f32.gmra.mxu0 %v253
    %v272 = vpop.f32.mrf.mxu0
    %v273 = vadd.f32 %v248, %v272
    %274 = vdwg.mxu0
    %vm275 = vcmask 64512
    %276 = vst.msk [vmem:[#allocation11] sm:$0xff] %vm275, %v273
    %s277 = scalar_lea.vmem [#allocation2], 8
    %v278 = vld [vmem:[%s277] sm:$0xff]
    %v280 = vsel %vm130, %v278, 0
    %282 = vmatpush.msra.mxu0 0.0
    %283 = vmatpush.msra.mxu0 0.0
    %284 = vmatpush.msra.mxu0 0.0
    %285 = vmatpush.msra.mxu0 0.0
    %286 = vmatpush.msra.mxu0 0.0
    %287 = vmatpush.msra.mxu0 0.0
    %288 = vmatpush.msra.mxu0 0.0
    %289 = vmatpush.msra.mxu0 0.0
    %290 = vmatpush.msra.mxu0 0.0
    %291 = vmatpush.msra.mxu0 0.0
    %292 = vmatpush.msra.mxu0 0.0
    %293 = vmatpush.msra.mxu0 0.0
    %294 = vmatpush.msra.mxu0 0.0
    %295 = vmatpush.msra.mxu0 0.0
    %296 = vmatpush.msra.mxu0 %v109
    %297 = vmatpush.msra.mxu0 %v108
    %298 = vmatmul.f32.gmra.mxu0 %v280
    %v299 = vpop.f32.mrf.mxu0
    %v300 = vadd.f32 %v128, %v299
    %301 = vdwg.mxu0
    %v302 = vmax.f32 %v300, 0.0
    %303 = vmatpush.msra.mxu0 0.0
    %304 = vmatpush.msra.mxu0 0.0
    %305 = vmatpush.msra.mxu0 0.0
    %306 = vmatpush.msra.mxu0 0.0
    %307 = vmatpush.msra.mxu0 0.0
    %308 = vmatpush.msra.mxu0 0.0
    %309 = vmatpush.msra.mxu0 0.0
    %310 = vmatpush.msra.mxu0 0.0
    %311 = vmatpush.msra.mxu0 0.0
    %312 = vmatpush.msra.mxu0 0.0
    %313 = vmatpush.msra.mxu0 0.0
    %314 = vmatpush.msra.mxu0 0.0
    %315 = vmatpush.msra.mxu0 %v118
    %316 = vmatpush.msra.mxu0 %v117
    %317 = vmatpush.msra.mxu0 %v116
    %318 = vmatpush.msra.mxu0 %v115
    %319 = vmatmul.f32.gmra.mxu0 %v253
    %v320 = vpop.f32.mrf.mxu0
    %v321 = vadd.f32 0.0, %v320
    %322 = vdwg.mxu0
    %v324 = vsel %vm155, %v302, 0
    %326 = vmatpush.msra.mxu0 0.0
    %327 = vmatpush.msra.mxu0 0.0
    %328 = vmatpush.msra.mxu0 0.0
    %329 = vmatpush.msra.mxu0 0.0
    %330 = vmatpush.msra.mxu0 0.0
    %331 = vmatpush.msra.mxu0 0.0
    %332 = vmatpush.msra.mxu0 0.0
    %333 = vmatpush.msra.mxu0 0.0
    %334 = vmatpush.msra.mxu0 0.0
    %335 = vmatpush.msra.mxu0 0.0
    %336 = vmatpush.msra.mxu0 0.0
    %337 = vmatpush.msra.mxu0 0.0
    %338 = vmatpush.msra.mxu0 %v114
    %339 = vmatpush.msra.mxu0 %v113
    %340 = vmatpush.msra.mxu0 %v112
    %341 = vmatpush.msra.mxu0 %v111
    %342 = vmatmul.f32.gmra.mxu0 %v324
    %v343 = vpop.f32.mrf.mxu0
    %v344 = vadd.f32 %v321, %v343
    %345 = vdwg.mxu0
    %v346 = vadd.f32 %v344, %v203
    %v347 = vxor.u32 %v346, 2147483648
    %v348 = vmul.f32 %v347, 1.442695
    %v349 = vpow.pop %v348
    %v350 = vadd.f32 %v349, 1.0
    %v351 = vrcp.pop %v350
    %v352 = vmul.f32 %v350, %v351
    %v353 = vsub.f32 1.0, %v352
    %v354 = vmul.f32 %v351, %v353
    %v355 = vadd.f32 %v351, %v354
    %vm356 = vweird.f32 %v350
    %vm357 = vweird.f32 %v351
    %vm358 = vmor %vm356, %vm357
    %v359 = vsel %vm358, %v351, %v355
    %v360 = vand.u32 2147483647, %v350
    %vm361 = vcmp.eq.f32.partialorder %v360, 8.507059e+37
    %v362 = vand.u32 %v350, 2147483648
    %v363 = vor.u32 1.1754944e-38, %v362
    %v364 = vsel %vm361, %v363, %v359
    %v365 = vmul.f32 1.0, %v364
    %367 = vrot.lane.b32.xlu0 %v346, 32
    %v368 = vpop.permute.xlu0 %367
    %v370 = vmul.f32 %v365, %v368
    %372 = vrot.lane.b32.xlu0 %v370, 64
    %v373 = vpop.permute.xlu0 %372
    %v375 = vadd.f32 %v346, %v373
    %v376 = vtanh.pop %v375
    %v377 = vsub.f32 1.0, %v365
    %379 = vrot.lane.b32.xlu0 %v376, 96
    %v380 = vpop.permute.xlu0 %379
    %v382 = vmul.f32 %v377, %v380
    %v383 = vmul.f32 %v365, %v246
    %v384 = vadd.f32 %v382, %v383
    %386 = vrot.lane.b32.xlu0 %v384, 96
    %v387 = vpop.permute.xlu0 %386
    %v388 = vsel %vm155, %v387, 0
    %390 = vmatpush.msra.mxu0 0.0
    %391 = vmatpush.msra.mxu0 0.0
    %392 = vmatpush.msra.mxu0 0.0
    %393 = vmatpush.msra.mxu0 0.0
    %394 = vmatpush.msra.mxu0 0.0
    %395 = vmatpush.msra.mxu0 0.0
    %396 = vmatpush.msra.mxu0 0.0
    %397 = vmatpush.msra.mxu0 0.0
    %398 = vmatpush.msra.mxu0 0.0
    %399 = vmatpush.msra.mxu0 0.0
    %400 = vmatpush.msra.mxu0 0.0
    %401 = vmatpush.msra.mxu0 0.0
    %402 = vmatpush.msra.mxu0 %v123
    %403 = vmatpush.msra.mxu0 %v122
    %404 = vmatpush.msra.mxu0 %v121
    %405 = vmatpush.msra.mxu0 %v120
    %406 = vmatmul.f32.gmra.mxu0 %v388
    %v407 = vpop.f32.mrf.mxu0
    %v408 = vadd.f32 %v248, %v407
    %409 = vdwg.mxu0
    %s410 = scalar_lea.vmem [#allocation11], 8
    %411 = vst.msk [vmem:[%s410] sm:$0xff] %vm275, %v408
    %s412 = scalar_lea.vmem [#allocation2], 16
    %v413 = vld [vmem:[%s412] sm:$0xff]
    %v415 = vsel %vm130, %v413, 0
    %417 = vmatpush.msra.mxu0 0.0
    %418 = vmatpush.msra.mxu0 0.0
    %419 = vmatpush.msra.mxu0 0.0
    %420 = vmatpush.msra.mxu0 0.0
    %421 = vmatpush.msra.mxu0 0.0
    %422 = vmatpush.msra.mxu0 0.0
    %423 = vmatpush.msra.mxu0 0.0
    %424 = vmatpush.msra.mxu0 0.0
    %425 = vmatpush.msra.mxu0 0.0
    %426 = vmatpush.msra.mxu0 0.0
    %427 = vmatpush.msra.mxu0 0.0
    %428 = vmatpush.msra.mxu0 0.0
    %429 = vmatpush.msra.mxu0 0.0
    %430 = vmatpush.msra.mxu0 0.0
    %431 = vmatpush.msra.mxu0 %v109
    %432 = vmatpush.msra.mxu0 %v108
    %433 = vmatmul.f32.gmra.mxu0 %v415
    %v434 = vpop.f32.mrf.mxu0
    %v435 = vadd.f32 %v128, %v434
    %436 = vdwg.mxu0
    %v437 = vmax.f32 %v435, 0.0
    %438 = vmatpush.msra.mxu0 0.0
    %439 = vmatpush.msra.mxu0 0.0
    %440 = vmatpush.msra.mxu0 0.0
    %441 = vmatpush.msra.mxu0 0.0
    %442 = vmatpush.msra.mxu0 0.0
    %443 = vmatpush.msra.mxu0 0.0
    %444 = vmatpush.msra.mxu0 0.0
    %445 = vmatpush.msra.mxu0 0.0
    %446 = vmatpush.msra.mxu0 0.0
    %447 = vmatpush.msra.mxu0 0.0
    %448 = vmatpush.msra.mxu0 0.0
    %449 = vmatpush.msra.mxu0 0.0
    %450 = vmatpush.msra.mxu0 %v118
    %451 = vmatpush.msra.mxu0 %v117
    %452 = vmatpush.msra.mxu0 %v116
    %453 = vmatpush.msra.mxu0 %v115
    %454 = vmatmul.f32.gmra.mxu0 %v388
    %v455 = vpop.f32.mrf.mxu0
    %v456 = vadd.f32 0.0, %v455
    %457 = vdwg.mxu0
    %v459 = vsel %vm155, %v437, 0
    %461 = vmatpush.msra.mxu0 0.0
    %462 = vmatpush.msra.mxu0 0.0
    %463 = vmatpush.msra.mxu0 0.0
    %464 = vmatpush.msra.mxu0 0.0
    %465 = vmatpush.msra.mxu0 0.0
    %466 = vmatpush.msra.mxu0 0.0
    %467 = vmatpush.msra.mxu0 0.0
    %468 = vmatpush.msra.mxu0 0.0
    %469 = vmatpush.msra.mxu0 0.0
    %470 = vmatpush.msra.mxu0 0.0
    %471 = vmatpush.msra.mxu0 0.0
    %472 = vmatpush.msra.mxu0 0.0
    %473 = vmatpush.msra.mxu0 %v114
    %474 = vmatpush.msra.mxu0 %v113
    %475 = vmatpush.msra.mxu0 %v112
    %476 = vmatpush.msra.mxu0 %v111
    %477 = vmatmul.f32.gmra.mxu0 %v459
    %v478 = vpop.f32.mrf.mxu0
    %v479 = vadd.f32 %v456, %v478
    %480 = vdwg.mxu0
    %v481 = vadd.f32 %v479, %v203
    %v482 = vxor.u32 %v481, 2147483648
    %v483 = vmul.f32 %v482, 1.442695
    %v484 = vpow.pop %v483
    %v485 = vadd.f32 %v484, 1.0
    %v486 = vrcp.pop %v485
    %v487 = vmul.f32 %v485, %v486
    %v488 = vsub.f32 1.0, %v487
    %v489 = vmul.f32 %v486, %v488
    %v490 = vadd.f32 %v486, %v489
    %vm491 = vweird.f32 %v485
    %vm492 = vweird.f32 %v486
    %vm493 = vmor %vm491, %vm492
    %v494 = vsel %vm493, %v486, %v490
    %v495 = vand.u32 2147483647, %v485
    %vm496 = vcmp.eq.f32.partialorder %v495, 8.507059e+37
    %v497 = vand.u32 %v485, 2147483648
    %v498 = vor.u32 1.1754944e-38, %v497
    %v499 = vsel %vm496, %v498, %v494
    %v500 = vmul.f32 1.0, %v499
    %502 = vrot.lane.b32.xlu0 %v481, 32
    %v503 = vpop.permute.xlu0 %502
    %v505 = vmul.f32 %v500, %v503
    %507 = vrot.lane.b32.xlu0 %v505, 64
    %v508 = vpop.permute.xlu0 %507
    %v510 = vadd.f32 %v481, %v508
    %v511 = vtanh.pop %v510
    %v512 = vsub.f32 1.0, %v500
    %514 = vrot.lane.b32.xlu0 %v511, 96
    %v515 = vpop.permute.xlu0 %514
    %v517 = vmul.f32 %v512, %v515
    %v518 = vmul.f32 %v500, %v384
    %v519 = vadd.f32 %v517, %v518
    %521 = vrot.lane.b32.xlu0 %v519, 96
    %v522 = vpop.permute.xlu0 %521
    %v523 = vsel %vm155, %v522, 0
    %525 = vmatpush.msra.mxu0 0.0
    %526 = vmatpush.msra.mxu0 0.0
    %527 = vmatpush.msra.mxu0 0.0
    %528 = vmatpush.msra.mxu0 0.0
    %529 = vmatpush.msra.mxu0 0.0
    %530 = vmatpush.msra.mxu0 0.0
    %531 = vmatpush.msra.mxu0 0.0
    %532 = vmatpush.msra.mxu0 0.0
    %533 = vmatpush.msra.mxu0 0.0
    %534 = vmatpush.msra.mxu0 0.0
    %535 = vmatpush.msra.mxu0 0.0
    %536 = vmatpush.msra.mxu0 0.0
    %537 = vmatpush.msra.mxu0 %v123
    %538 = vmatpush.msra.mxu0 %v122
    %539 = vmatpush.msra.mxu0 %v121
    %540 = vmatpush.msra.mxu0 %v120
    %541 = vmatmul.f32.gmra.mxu0 %v523
    %v542 = vpop.f32.mrf.mxu0
    %v543 = vadd.f32 %v248, %v542
    %544 = vdwg.mxu0
    %s545 = scalar_lea.vmem [#allocation11], 16
    %546 = vst.msk [vmem:[%s545] sm:$0xff] %vm275, %v543
    %s547 = scalar_lea.vmem [#allocation2], 24
    %v548 = vld [vmem:[%s547] sm:$0xff]
    %v550 = vsel %vm130, %v548, 0
    %552 = vmatpush.msra.mxu0 0.0
    %553 = vmatpush.msra.mxu0 0.0
    %554 = vmatpush.msra.mxu0 0.0
    %555 = vmatpush.msra.mxu0 0.0
    %556 = vmatpush.msra.mxu0 0.0
    %557 = vmatpush.msra.mxu0 0.0
    %558 = vmatpush.msra.mxu0 0.0
    %559 = vmatpush.msra.mxu0 0.0
    %560 = vmatpush.msra.mxu0 0.0
    %561 = vmatpush.msra.mxu0 0.0
    %562 = vmatpush.msra.mxu0 0.0
    %563 = vmatpush.msra.mxu0 0.0
    %564 = vmatpush.msra.mxu0 0.0
    %565 = vmatpush.msra.mxu0 0.0
    %566 = vmatpush.msra.mxu0 %v109
    %567 = vmatpush.msra.mxu0 %v108
    %568 = vmatmul.f32.gmra.mxu0 %v550
    %v569 = vpop.f32.mrf.mxu0
    %v570 = vadd.f32 %v128, %v569
    %571 = vdwg.mxu0
    %v572 = vmax.f32 %v570, 0.0
    %573 = vmatpush.msra.mxu0 0.0
    %574 = vmatpush.msra.mxu0 0.0
    %575 = vmatpush.msra.mxu0 0.0
    %576 = vmatpush.msra.mxu0 0.0
    %577 = vmatpush.msra.mxu0 0.0
    %578 = vmatpush.msra.mxu0 0.0
    %579 = vmatpush.msra.mxu0 0.0
    %580 = vmatpush.msra.mxu0 0.0
    %581 = vmatpush.msra.mxu0 0.0
    %582 = vmatpush.msra.mxu0 0.0
    %583 = vmatpush.msra.mxu0 0.0
    %584 = vmatpush.msra.mxu0 0.0
    %585 = vmatpush.msra.mxu0 %v118
    %586 = vmatpush.msra.mxu0 %v117
    %587 = vmatpush.msra.mxu0 %v116
    %588 = vmatpush.msra.mxu0 %v115
    %589 = vmatmul.f32.gmra.mxu0 %v523
    %v590 = vpop.f32.mrf.mxu0
    %v591 = vadd.f32 0.0, %v590
    %592 = vdwg.mxu0
    %v594 = vsel %vm155, %v572, 0
    %596 = vmatpush.msra.mxu0 0.0
    %597 = vmatpush.msra.mxu0 0.0
    %598 = vmatpush.msra.mxu0 0.0
    %599 = vmatpush.msra.mxu0 0.0
    %600 = vmatpush.msra.mxu0 0.0
    %601 = vmatpush.msra.mxu0 0.0
    %602 = vmatpush.msra.mxu0 0.0
    %603 = vmatpush.msra.mxu0 0.0
    %604 = vmatpush.msra.mxu0 0.0
    %605 = vmatpush.msra.mxu0 0.0
    %606 = vmatpush.msra.mxu0 0.0
    %607 = vmatpush.msra.mxu0 0.0
    %608 = vmatpush.msra.mxu0 %v114
    %609 = vmatpush.msra.mxu0 %v113
    %610 = vmatpush.msra.mxu0 %v112
    %611 = vmatpush.msra.mxu0 %v111
    %612 = vmatmul.f32.gmra.mxu0 %v594
    %v613 = vpop.f32.mrf.mxu0
    %v614 = vadd.f32 %v591, %v613
    %615 = vdwg.mxu0
    %v616 = vadd.f32 %v614, %v203
    %v617 = vxor.u32 %v616, 2147483648
    %v618 = vmul.f32 %v617, 1.442695
    %v619 = vpow.pop %v618
    %v620 = vadd.f32 %v619, 1.0
    %v621 = vrcp.pop %v620
    %v622 = vmul.f32 %v620, %v621
    %v623 = vsub.f32 1.0, %v622
    %v624 = vmul.f32 %v621, %v623
    %v625 = vadd.f32 %v621, %v624
    %vm626 = vweird.f32 %v620
    %vm627 = vweird.f32 %v621
    %vm628 = vmor %vm626, %vm627
    %v629 = vsel %vm628, %v621, %v625
    %v630 = vand.u32 2147483647, %v620
    %vm631 = vcmp.eq.f32.partialorder %v630, 8.507059e+37
    %v632 = vand.u32 %v620, 2147483648
    %v633 = vor.u32 1.1754944e-38, %v632
    %v634 = vsel %vm631, %v633, %v629
    %v635 = vmul.f32 1.0, %v634
    %637 = vrot.lane.b32.xlu0 %v616, 32
    %v638 = vpop.permute.xlu0 %637
    %v640 = vmul.f32 %v635, %v638
    %642 = vrot.lane.b32.xlu0 %v640, 64
    %v643 = vpop.permute.xlu0 %642
    %v645 = vadd.f32 %v616, %v643
    %v646 = vtanh.pop %v645
    %v647 = vsub.f32 1.0, %v635
    %649 = vrot.lane.b32.xlu0 %v646, 96
    %v650 = vpop.permute.xlu0 %649
    %v652 = vmul.f32 %v647, %v650
    %v653 = vmul.f32 %v635, %v519
    %v654 = vadd.f32 %v652, %v653
    %656 = vrot.lane.b32.xlu0 %v654, 96
    %v657 = vpop.permute.xlu0 %656
    %v658 = vsel %vm155, %v657, 0
    %660 = vmatpush.msra.mxu0 0.0
    %661 = vmatpush.msra.mxu0 0.0
    %662 = vmatpush.msra.mxu0 0.0
    %663 = vmatpush.msra.mxu0 0.0
    %664 = vmatpush.msra.mxu0 0.0
    %665 = vmatpush.msra.mxu0 0.0
    %666 = vmatpush.msra.mxu0 0.0
    %667 = vmatpush.msra.mxu0 0.0
    %668 = vmatpush.msra.mxu0 0.0
    %669 = vmatpush.msra.mxu0 0.0
    %670 = vmatpush.msra.mxu0 0.0
    %671 = vmatpush.msra.mxu0 0.0
    %672 = vmatpush.msra.mxu0 %v123
    %673 = vmatpush.msra.mxu0 %v122
    %674 = vmatpush.msra.mxu0 %v121
    %675 = vmatpush.msra.mxu0 %v120
    %676 = vmatmul.f32.gmra.mxu0 %v658
    %v677 = vpop.f32.mrf.mxu0
    %v678 = vadd.f32 %v248, %v677
    %679 = vdwg.mxu0
    %s680 = scalar_lea.vmem [#allocation11], 24
    %681 = vst.msk [vmem:[%s680] sm:$0xff] %vm275, %v678
    %s682 = scalar_lea.vmem [#allocation2], 32
    %v683 = vld [vmem:[%s682] sm:$0xff]
    %v685 = vsel %vm130, %v683, 0
    %687 = vmatpush.msra.mxu0 0.0
    %688 = vmatpush.msra.mxu0 0.0
    %689 = vmatpush.msra.mxu0 0.0
    %690 = vmatpush.msra.mxu0 0.0
    %691 = vmatpush.msra.mxu0 0.0
    %692 = vmatpush.msra.mxu0 0.0
    %693 = vmatpush.msra.mxu0 0.0
    %694 = vmatpush.msra.mxu0 0.0
    %695 = vmatpush.msra.mxu0 0.0
    %696 = vmatpush.msra.mxu0 0.0
    %697 = vmatpush.msra.mxu0 0.0
    %698 = vmatpush.msra.mxu0 0.0
    %699 = vmatpush.msra.mxu0 0.0
    %700 = vmatpush.msra.mxu0 0.0
    %701 = vmatpush.msra.mxu0 %v109
    %702 = vmatpush.msra.mxu0 %v108
    %703 = vmatmul.f32.gmra.mxu0 %v685
    %v704 = vpop.f32.mrf.mxu0
    %v705 = vadd.f32 %v128, %v704
    %706 = vdwg.mxu0
    %v707 = vmax.f32 %v705, 0.0
    %708 = vmatpush.msra.mxu0 0.0
    %709 = vmatpush.msra.mxu0 0.0
    %710 = vmatpush.msra.mxu0 0.0
    %711 = vmatpush.msra.mxu0 0.0
    %712 = vmatpush.msra.mxu0 0.0
    %713 = vmatpush.msra.mxu0 0.0
    %714 = vmatpush.msra.mxu0 0.0
    %715 = vmatpush.msra.mxu0 0.0
    %716 = vmatpush.msra.mxu0 0.0
    %717 = vmatpush.msra.mxu0 0.0
    %718 = vmatpush.msra.mxu0 0.0
    %719 = vmatpush.msra.mxu0 0.0
    %720 = vmatpush.msra.mxu0 %v118
    %721 = vmatpush.msra.mxu0 %v117
    %722 = vmatpush.msra.mxu0 %v116
    %723 = vmatpush.msra.mxu0 %v115
    %724 = vmatmul.f32.gmra.mxu0 %v658
    %v725 = vpop.f32.mrf.mxu0
    %v726 = vadd.f32 0.0, %v725
    %727 = vdwg.mxu0
    %v729 = vsel %vm155, %v707, 0
    %731 = vmatpush.msra.mxu0 0.0
    %732 = vmatpush.msra.mxu0 0.0
    %733 = vmatpush.msra.mxu0 0.0
    %734 = vmatpush.msra.mxu0 0.0
    %735 = vmatpush.msra.mxu0 0.0
    %736 = vmatpush.msra.mxu0 0.0
    %737 = vmatpush.msra.mxu0 0.0
    %738 = vmatpush.msra.mxu0 0.0
    %739 = vmatpush.msra.mxu0 0.0
    %740 = vmatpush.msra.mxu0 0.0
    %741 = vmatpush.msra.mxu0 0.0
    %742 = vmatpush.msra.mxu0 0.0
    %743 = vmatpush.msra.mxu0 %v114
    %744 = vmatpush.msra.mxu0 %v113
    %745 = vmatpush.msra.mxu0 %v112
    %746 = vmatpush.msra.mxu0 %v111
    %747 = vmatmul.f32.gmra.mxu0 %v729
    %v748 = vpop.f32.mrf.mxu0
    %v749 = vadd.f32 %v726, %v748
    %750 = vdwg.mxu0
    %v751 = vadd.f32 %v749, %v203
    %v752 = vxor.u32 %v751, 2147483648
    %v753 = vmul.f32 %v752, 1.442695
    %v754 = vpow.pop %v753
    %v755 = vadd.f32 %v754, 1.0
    %v756 = vrcp.pop %v755
    %v757 = vmul.f32 %v755, %v756
    %v758 = vsub.f32 1.0, %v757
    %v759 = vmul.f32 %v756, %v758
    %v760 = vadd.f32 %v756, %v759
    %vm761 = vweird.f32 %v755
    %vm762 = vweird.f32 %v756
    %vm763 = vmor %vm761, %vm762
    %v764 = vsel %vm763, %v756, %v760
    %v765 = vand.u32 2147483647, %v755
    %vm766 = vcmp.eq.f32.partialorder %v765, 8.507059e+37
    %v767 = vand.u32 %v755, 2147483648
    %v768 = vor.u32 1.1754944e-38, %v767
    %v769 = vsel %vm766, %v768, %v764
    %v770 = vmul.f32 1.0, %v769
    %772 = vrot.lane.b32.xlu0 %v751, 32
    %v773 = vpop.permute.xlu0 %772
    %v775 = vmul.f32 %v770, %v773
    %777 = vrot.lane.b32.xlu0 %v775, 64
    %v778 = vpop.permute.xlu0 %777
    %v780 = vadd.f32 %v751, %v778
    %v781 = vtanh.pop %v780
    %v782 = vsub.f32 1.0, %v770
    %784 = vrot.lane.b32.xlu0 %v781, 96
    %v785 = vpop.permute.xlu0 %784
    %v787 = vmul.f32 %v782, %v785
    %v788 = vmul.f32 %v770, %v654
    %v789 = vadd.f32 %v787, %v788
    %791 = vrot.lane.b32.xlu0 %v789, 96
    %v792 = vpop.permute.xlu0 %791
    %v793 = vsel %vm155, %v792, 0
    %795 = vmatpush.msra.mxu0 0.0
    %796 = vmatpush.msra.mxu0 0.0
    %797 = vmatpush.msra.mxu0 0.0
    %798 = vmatpush.msra.mxu0 0.0
    %799 = vmatpush.msra.mxu0 0.0
    %800 = vmatpush.msra.mxu0 0.0
    %801 = vmatpush.msra.mxu0 0.0
    %802 = vmatpush.msra.mxu0 0.0
    %803 = vmatpush.msra.mxu0 0.0
    %804 = vmatpush.msra.mxu0 0.0
    %805 = vmatpush.msra.mxu0 0.0
    %806 = vmatpush.msra.mxu0 0.0
    %807 = vmatpush.msra.mxu0 %v123
    %808 = vmatpush.msra.mxu0 %v122
    %809 = vmatpush.msra.mxu0 %v121
    %810 = vmatpush.msra.mxu0 %v120
    %811 = vmatmul.f32.gmra.mxu0 %v793
    %v812 = vpop.f32.mrf.mxu0
    %v813 = vadd.f32 %v248, %v812
    %814 = vdwg.mxu0
    %s815 = scalar_lea.vmem [#allocation11], 32
    %816 = vst.msk [vmem:[%s815] sm:$0xff] %vm275, %v813
    %s817 = scalar_lea.vmem [#allocation2], 40
    %v818 = vld [vmem:[%s817] sm:$0xff]
    %v820 = vsel %vm130, %v818, 0
    %822 = vmatpush.msra.mxu0 0.0
    %823 = vmatpush.msra.mxu0 0.0
    %824 = vmatpush.msra.mxu0 0.0
    %825 = vmatpush.msra.mxu0 0.0
    %826 = vmatpush.msra.mxu0 0.0
    %827 = vmatpush.msra.mxu0 0.0
    %828 = vmatpush.msra.mxu0 0.0
    %829 = vmatpush.msra.mxu0 0.0
    %830 = vmatpush.msra.mxu0 0.0
    %831 = vmatpush.msra.mxu0 0.0
    %832 = vmatpush.msra.mxu0 0.0
    %833 = vmatpush.msra.mxu0 0.0
    %834 = vmatpush.msra.mxu0 0.0
    %835 = vmatpush.msra.mxu0 0.0
    %836 = vmatpush.msra.mxu0 %v109
    %837 = vmatpush.msra.mxu0 %v108
    %838 = vmatmul.f32.gmra.mxu0 %v820
    %v839 = vpop.f32.mrf.mxu0
    %v840 = vadd.f32 %v128, %v839
    %841 = vdwg.mxu0
    %v842 = vmax.f32 %v840, 0.0
    %843 = vmatpush.msra.mxu0 0.0
    %844 = vmatpush.msra.mxu0 0.0
    %845 = vmatpush.msra.mxu0 0.0
    %846 = vmatpush.msra.mxu0 0.0
    %847 = vmatpush.msra.mxu0 0.0
    %848 = vmatpush.msra.mxu0 0.0
    %849 = vmatpush.msra.mxu0 0.0
    %850 = vmatpush.msra.mxu0 0.0
    %851 = vmatpush.msra.mxu0 0.0
    %852 = vmatpush.msra.mxu0 0.0
    %853 = vmatpush.msra.mxu0 0.0
    %854 = vmatpush.msra.mxu0 0.0
    %855 = vmatpush.msra.mxu0 %v118
    %856 = vmatpush.msra.mxu0 %v117
    %857 = vmatpush.msra.mxu0 %v116
    %858 = vmatpush.msra.mxu0 %v115
    %859 = vmatmul.f32.gmra.mxu0 %v793
    %v860 = vpop.f32.mrf.mxu0
    %v861 = vadd.f32 0.0, %v860
    %862 = vdwg.mxu0
    %v864 = vsel %vm155, %v842, 0
    %866 = vmatpush.msra.mxu0 0.0
    %867 = vmatpush.msra.mxu0 0.0
    %868 = vmatpush.msra.mxu0 0.0
    %869 = vmatpush.msra.mxu0 0.0
    %870 = vmatpush.msra.mxu0 0.0
    %871 = vmatpush.msra.mxu0 0.0
    %872 = vmatpush.msra.mxu0 0.0
    %873 = vmatpush.msra.mxu0 0.0
    %874 = vmatpush.msra.mxu0 0.0
    %875 = vmatpush.msra.mxu0 0.0
    %876 = vmatpush.msra.mxu0 0.0
    %877 = vmatpush.msra.mxu0 0.0
    %878 = vmatpush.msra.mxu0 %v114
    %879 = vmatpush.msra.mxu0 %v113
    %880 = vmatpush.msra.mxu0 %v112
    %881 = vmatpush.msra.mxu0 %v111
    %882 = vmatmul.f32.gmra.mxu0 %v864
    %v883 = vpop.f32.mrf.mxu0
    %v884 = vadd.f32 %v861, %v883
    %885 = vdwg.mxu0
    %v886 = vadd.f32 %v884, %v203
    %v887 = vxor.u32 %v886, 2147483648
    %v888 = vmul.f32 %v887, 1.442695
    %v889 = vpow.pop %v888
    %v890 = vadd.f32 %v889, 1.0
    %v891 = vrcp.pop %v890
    %v892 = vmul.f32 %v890, %v891
    %v893 = vsub.f32 1.0, %v892
    %v894 = vmul.f32 %v891, %v893
    %v895 = vadd.f32 %v891, %v894
    %vm896 = vweird.f32 %v890
    %vm897 = vweird.f32 %v891
    %vm898 = vmor %vm896, %vm897
    %v899 = vsel %vm898, %v891, %v895
    %v900 = vand.u32 2147483647, %v890
    %vm901 = vcmp.eq.f32.partialorder %v900, 8.507059e+37
    %v902 = vand.u32 %v890, 2147483648
    %v903 = vor.u32 1.1754944e-38, %v902
    %v904 = vsel %vm901, %v903, %v899
    %v905 = vmul.f32 1.0, %v904
    %907 = vrot.lane.b32.xlu0 %v886, 32
    %v908 = vpop.permute.xlu0 %907
    %v910 = vmul.f32 %v905, %v908
    %912 = vrot.lane.b32.xlu0 %v910, 64
    %v913 = vpop.permute.xlu0 %912
    %v915 = vadd.f32 %v886, %v913
    %v916 = vtanh.pop %v915
    %v917 = vsub.f32 1.0, %v905
    %919 = vrot.lane.b32.xlu0 %v916, 96
    %v920 = vpop.permute.xlu0 %919
    %v922 = vmul.f32 %v917, %v920
    %v923 = vmul.f32 %v905, %v789
    %v924 = vadd.f32 %v922, %v923
    %926 = vrot.lane.b32.xlu0 %v924, 96
    %v927 = vpop.permute.xlu0 %926
    %v928 = vsel %vm155, %v927, 0
    %930 = vmatpush.msra.mxu0 0.0
    %931 = vmatpush.msra.mxu0 0.0
    %932 = vmatpush.msra.mxu0 0.0
    %933 = vmatpush.msra.mxu0 0.0
    %934 = vmatpush.msra.mxu0 0.0
    %935 = vmatpush.msra.mxu0 0.0
    %936 = vmatpush.msra.mxu0 0.0
    %937 = vmatpush.msra.mxu0 0.0
    %938 = vmatpush.msra.mxu0 0.0
    %939 = vmatpush.msra.mxu0 0.0
    %940 = vmatpush.msra.mxu0 0.0
    %941 = vmatpush.msra.mxu0 0.0
    %942 = vmatpush.msra.mxu0 %v123
    %943 = vmatpush.msra.mxu0 %v122
    %944 = vmatpush.msra.mxu0 %v121
    %945 = vmatpush.msra.mxu0 %v120
    %946 = vmatmul.f32.gmra.mxu0 %v928
    %v947 = vpop.f32.mrf.mxu0
    %v948 = vadd.f32 %v248, %v947
    %949 = vdwg.mxu0
    %s950 = scalar_lea.vmem [#allocation11], 40
    %951 = vst.msk [vmem:[%s950] sm:$0xff] %vm275, %v948
    %s952 = scalar_lea.vmem [#allocation2], 48
    %v953 = vld [vmem:[%s952] sm:$0xff]
    %v955 = vsel %vm130, %v953, 0
    %957 = vmatpush.msra.mxu0 0.0
    %958 = vmatpush.msra.mxu0 0.0
    %959 = vmatpush.msra.mxu0 0.0
    %960 = vmatpush.msra.mxu0 0.0
    %961 = vmatpush.msra.mxu0 0.0
    %962 = vmatpush.msra.mxu0 0.0
    %963 = vmatpush.msra.mxu0 0.0
    %964 = vmatpush.msra.mxu0 0.0
    %965 = vmatpush.msra.mxu0 0.0
    %966 = vmatpush.msra.mxu0 0.0
    %967 = vmatpush.msra.mxu0 0.0
    %968 = vmatpush.msra.mxu0 0.0
    %969 = vmatpush.msra.mxu0 0.0
    %970 = vmatpush.msra.mxu0 0.0
    %971 = vmatpush.msra.mxu0 %v109
    %972 = vmatpush.msra.mxu0 %v108
    %973 = vmatmul.f32.gmra.mxu0 %v955
    %v974 = vpop.f32.mrf.mxu0
    %v975 = vadd.f32 %v128, %v974
    %976 = vdwg.mxu0
    %v977 = vmax.f32 %v975, 0.0
    %978 = vmatpush.msra.mxu0 0.0
    %979 = vmatpush.msra.mxu0 0.0
    %980 = vmatpush.msra.mxu0 0.0
    %981 = vmatpush.msra.mxu0 0.0
    %982 = vmatpush.msra.mxu0 0.0
    %983 = vmatpush.msra.mxu0 0.0
    %984 = vmatpush.msra.mxu0 0.0
    %985 = vmatpush.msra.mxu0 0.0
    %986 = vmatpush.msra.mxu0 0.0
    %987 = vmatpush.msra.mxu0 0.0
    %988 = vmatpush.msra.mxu0 0.0
    %989 = vmatpush.msra.mxu0 0.0
    %990 = vmatpush.msra.mxu0 %v118
    %991 = vmatpush.msra.mxu0 %v117
    %992 = vmatpush.msra.mxu0 %v116
    %993 = vmatpush.msra.mxu0 %v115
    %994 = vmatmul.f32.gmra.mxu0 %v928
    %v995 = vpop.f32.mrf.mxu0
    %v996 = vadd.f32 0.0, %v995
    %997 = vdwg.mxu0
    %v999 = vsel %vm155, %v977, 0
    %1001 = vmatpush.msra.mxu0 0.0
    %1002 = vmatpush.msra.mxu0 0.0
    %1003 = vmatpush.msra.mxu0 0.0
    %1004 = vmatpush.msra.mxu0 0.0
    %1005 = vmatpush.msra.mxu0 0.0
    %1006 = vmatpush.msra.mxu0 0.0
    %1007 = vmatpush.msra.mxu0 0.0
    %1008 = vmatpush.msra.mxu0 0.0
    %1009 = vmatpush.msra.mxu0 0.0
    %1010 = vmatpush.msra.mxu0 0.0
    %1011 = vmatpush.msra.mxu0 0.0
    %1012 = vmatpush.msra.mxu0 0.0
    %1013 = vmatpush.msra.mxu0 %v114
    %1014 = vmatpush.msra.mxu0 %v113
    %1015 = vmatpush.msra.mxu0 %v112
    %1016 = vmatpush.msra.mxu0 %v111
    %1017 = vmatmul.f32.gmra.mxu0 %v999
    %v1018 = vpop.f32.mrf.mxu0
    %v1019 = vadd.f32 %v996, %v1018
    %1020 = vdwg.mxu0
    %v1021 = vadd.f32 %v1019, %v203
    %v1022 = vxor.u32 %v1021, 2147483648
    %v1023 = vmul.f32 %v1022, 1.442695
    %v1024 = vpow.pop %v1023
    %v1025 = vadd.f32 %v1024, 1.0
    %v1026 = vrcp.pop %v1025
    %v1027 = vmul.f32 %v1025, %v1026
    %v1028 = vsub.f32 1.0, %v1027
    %v1029 = vmul.f32 %v1026, %v1028
    %v1030 = vadd.f32 %v1026, %v1029
    %vm1031 = vweird.f32 %v1025
    %vm1032 = vweird.f32 %v1026
    %vm1033 = vmor %vm1031, %vm1032
    %v1034 = vsel %vm1033, %v1026, %v1030
    %v1035 = vand.u32 2147483647, %v1025
    %vm1036 = vcmp.eq.f32.partialorder %v1035, 8.507059e+37
    %v1037 = vand.u32 %v1025, 2147483648
    %v1038 = vor.u32 1.1754944e-38, %v1037
    %v1039 = vsel %vm1036, %v1038, %v1034
    %v1040 = vmul.f32 1.0, %v1039
    %1042 = vrot.lane.b32.xlu0 %v1021, 32
    %v1043 = vpop.permute.xlu0 %1042
    %v1045 = vmul.f32 %v1040, %v1043
    %1047 = vrot.lane.b32.xlu0 %v1045, 64
    %v1048 = vpop.permute.xlu0 %1047
    %v1050 = vadd.f32 %v1021, %v1048
    %v1051 = vtanh.pop %v1050
    %v1052 = vsub.f32 1.0, %v1040
    %1054 = vrot.lane.b32.xlu0 %v1051, 96
    %v1055 = vpop.permute.xlu0 %1054
    %v1057 = vmul.f32 %v1052, %v1055
    %v1058 = vmul.f32 %v1040, %v924
    %v1059 = vadd.f32 %v1057, %v1058
    %1061 = vrot.lane.b32.xlu0 %v1059, 96
    %v1062 = vpop.permute.xlu0 %1061
    %v1063 = vsel %vm155, %v1062, 0
    %1065 = vmatpush.msra.mxu0 0.0
    %1066 = vmatpush.msra.mxu0 0.0
    %1067 = vmatpush.msra.mxu0 0.0
    %1068 = vmatpush.msra.mxu0 0.0
    %1069 = vmatpush.msra.mxu0 0.0
    %1070 = vmatpush.msra.mxu0 0.0
    %1071 = vmatpush.msra.mxu0 0.0
    %1072 = vmatpush.msra.mxu0 0.0
    %1073 = vmatpush.msra.mxu0 0.0
    %1074 = vmatpush.msra.mxu0 0.0
    %1075 = vmatpush.msra.mxu0 0.0
    %1076 = vmatpush.msra.mxu0 0.0
    %1077 = vmatpush.msra.mxu0 %v123
    %1078 = vmatpush.msra.mxu0 %v122
    %1079 = vmatpush.msra.mxu0 %v121
    %1080 = vmatpush.msra.mxu0 %v120
    %1081 = vmatmul.f32.gmra.mxu0 %v1063
    %v1082 = vpop.f32.mrf.mxu0
    %v1083 = vadd.f32 %v248, %v1082
    %1084 = vdwg.mxu0
    %s1085 = scalar_lea.vmem [#allocation11], 48
    %1086 = vst.msk [vmem:[%s1085] sm:$0xff] %vm275, %v1083
    %s1087 = scalar_lea.vmem [#allocation2], 56
    %v1088 = vld [vmem:[%s1087] sm:$0xff]
    %v1090 = vsel %vm130, %v1088, 0
    %1092 = vmatpush.msra.mxu0 0.0
    %1093 = vmatpush.msra.mxu0 0.0
    %1094 = vmatpush.msra.mxu0 0.0
    %1095 = vmatpush.msra.mxu0 0.0
    %1096 = vmatpush.msra.mxu0 0.0
    %1097 = vmatpush.msra.mxu0 0.0
    %1098 = vmatpush.msra.mxu0 0.0
    %1099 = vmatpush.msra.mxu0 0.0
    %1100 = vmatpush.msra.mxu0 0.0
    %1101 = vmatpush.msra.mxu0 0.0
    %1102 = vmatpush.msra.mxu0 0.0
    %1103 = vmatpush.msra.mxu0 0.0
    %1104 = vmatpush.msra.mxu0 0.0
    %1105 = vmatpush.msra.mxu0 0.0
    %1106 = vmatpush.msra.mxu0 %v109
    %1107 = vmatpush.msra.mxu0 %v108
    %1108 = vmatmul.f32.gmra.mxu0 %v1090
    %v1109 = vpop.f32.mrf.mxu0
    %v1110 = vadd.f32 %v128, %v1109
    %1111 = vdwg.mxu0
    %v1112 = vmax.f32 %v1110, 0.0
    %1113 = vmatpush.msra.mxu0 0.0
    %1114 = vmatpush.msra.mxu0 0.0
    %1115 = vmatpush.msra.mxu0 0.0
    %1116 = vmatpush.msra.mxu0 0.0
    %1117 = vmatpush.msra.mxu0 0.0
    %1118 = vmatpush.msra.mxu0 0.0
    %1119 = vmatpush.msra.mxu0 0.0
    %1120 = vmatpush.msra.mxu0 0.0
    %1121 = vmatpush.msra.mxu0 0.0
    %1122 = vmatpush.msra.mxu0 0.0
    %1123 = vmatpush.msra.mxu0 0.0
    %1124 = vmatpush.msra.mxu0 0.0
    %1125 = vmatpush.msra.mxu0 %v118
    %1126 = vmatpush.msra.mxu0 %v117
    %1127 = vmatpush.msra.mxu0 %v116
    %1128 = vmatpush.msra.mxu0 %v115
    %1129 = vmatmul.f32.gmra.mxu0 %v1063
    %v1130 = vpop.f32.mrf.mxu0
    %v1131 = vadd.f32 0.0, %v1130
    %1132 = vdwg.mxu0
    %v1134 = vsel %vm155, %v1112, 0
    %1136 = vmatpush.msra.mxu0 0.0
    %1137 = vmatpush.msra.mxu0 0.0
    %1138 = vmatpush.msra.mxu0 0.0
    %1139 = vmatpush.msra.mxu0 0.0
    %1140 = vmatpush.msra.mxu0 0.0
    %1141 = vmatpush.msra.mxu0 0.0
    %1142 = vmatpush.msra.mxu0 0.0
    %1143 = vmatpush.msra.mxu0 0.0
    %1144 = vmatpush.msra.mxu0 0.0
    %1145 = vmatpush.msra.mxu0 0.0
    %1146 = vmatpush.msra.mxu0 0.0
    %1147 = vmatpush.msra.mxu0 0.0
    %1148 = vmatpush.msra.mxu0 %v114
    %1149 = vmatpush.msra.mxu0 %v113
    %1150 = vmatpush.msra.mxu0 %v112
    %1151 = vmatpush.msra.mxu0 %v111
    %1152 = vmatmul.f32.gmra.mxu0 %v1134
    %v1153 = vpop.f32.mrf.mxu0
    %v1154 = vadd.f32 %v1131, %v1153
    %1155 = vdwg.mxu0
    %v1156 = vadd.f32 %v1154, %v203
    %v1157 = vxor.u32 %v1156, 2147483648
    %v1158 = vmul.f32 %v1157, 1.442695
    %v1159 = vpow.pop %v1158
    %v1160 = vadd.f32 %v1159, 1.0
    %v1161 = vrcp.pop %v1160
    %v1162 = vmul.f32 %v1160, %v1161
    %v1163 = vsub.f32 1.0, %v1162
    %v1164 = vmul.f32 %v1161, %v1163
    %v1165 = vadd.f32 %v1161, %v1164
    %vm1166 = vweird.f32 %v1160
    %vm1167 = vweird.f32 %v1161
    %vm1168 = vmor %vm1166, %vm1167
    %v1169 = vsel %vm1168, %v1161, %v1165
    %v1170 = vand.u32 2147483647, %v1160
    %vm1171 = vcmp.eq.f32.partialorder %v1170, 8.507059e+37
    %v1172 = vand.u32 %v1160, 2147483648
    %v1173 = vor.u32 1.1754944e-38, %v1172
    %v1174 = vsel %vm1171, %v1173, %v1169
    %v1175 = vmul.f32 1.0, %v1174
    %1177 = vrot.lane.b32.xlu0 %v1156, 32
    %v1178 = vpop.permute.xlu0 %1177
    %v1180 = vmul.f32 %v1175, %v1178
    %1182 = vrot.lane.b32.xlu0 %v1180, 64
    %v1183 = vpop.permute.xlu0 %1182
    %v1185 = vadd.f32 %v1156, %v1183
    %v1186 = vtanh.pop %v1185
    %v1187 = vsub.f32 1.0, %v1175
    %1189 = vrot.lane.b32.xlu0 %v1186, 96
    %v1190 = vpop.permute.xlu0 %1189
    %v1192 = vmul.f32 %v1187, %v1190
    %v1193 = vmul.f32 %v1175, %v1059
    %v1194 = vadd.f32 %v1192, %v1193
    %1196 = vrot.lane.b32.xlu0 %v1194, 96
    %v1197 = vpop.permute.xlu0 %1196
    %v1198 = vsel %vm155, %v1197, 0
    %1200 = vmatpush.msra.mxu0 0.0
    %1201 = vmatpush.msra.mxu0 0.0
    %1202 = vmatpush.msra.mxu0 0.0
    %1203 = vmatpush.msra.mxu0 0.0
    %1204 = vmatpush.msra.mxu0 0.0
    %1205 = vmatpush.msra.mxu0 0.0
    %1206 = vmatpush.msra.mxu0 0.0
    %1207 = vmatpush.msra.mxu0 0.0
    %1208 = vmatpush.msra.mxu0 0.0
    %1209 = vmatpush.msra.mxu0 0.0
    %1210 = vmatpush.msra.mxu0 0.0
    %1211 = vmatpush.msra.mxu0 0.0
    %1212 = vmatpush.msra.mxu0 %v123
    %1213 = vmatpush.msra.mxu0 %v122
    %1214 = vmatpush.msra.mxu0 %v121
    %1215 = vmatpush.msra.mxu0 %v120
    %1216 = vmatmul.f32.gmra.mxu0 %v1198
    %v1217 = vpop.f32.mrf.mxu0
    %v1218 = vadd.f32 %v248, %v1217
    %1219 = vdwg.mxu0
    %s1220 = scalar_lea.vmem [#allocation11], 56
    %1221 = vst.msk [vmem:[%s1220] sm:$0xff] %vm275, %v1218
    %1223 = vst.msk [vmem:[#allocation12] sm:$0xff] %vm155, %v1197
    // Predicated region
    $region58: #{rnn_model_forward.1} parent=1 // pred_check
      _
    $region59: #{rnn_model_forward.1} parent=1 // pred_check_branch
      %1225 = sbr.rel (0) target = $region61
    $region60: #{rnn_model_forward.1} parent=1 // pred_region
      %1227 = vsyncadd [#allocation4], 0
      %s1228 = sshll.u32 [#allocation11], 4
      %s1229 = int_to_ptr.vmem [resolvable:$true] %s1228
      %s1230 = sshll.u32 %s9, 4
      %s1231 = int_to_ptr.hbm [resolvable:$true] %s1230
      %1236 = dma.vmem_to_hbm [thread:$0]  %s1229, 1024, %s1231, [#allocation4], 128, 128, 8
    $region61: #{rnn_model_forward.1} parent=1 // pred_fallthru
      _
    // Predicated region
    $region62: #{rnn_model_forward.1} parent=1 // pred_check
      _
    $region63: #{rnn_model_forward.1} parent=1 // pred_check_branch
      %1238 = sbr.rel (0) target = $region65
    $region64: #{rnn_model_forward.1} parent=1 // pred_region
      %1240 = vsyncadd [#allocation13], 0
      %s1242 = sshll.u32 [#allocation12], 4
      %s1243 = int_to_ptr.vmem [resolvable:$true] %s1242
      %s1244 = sshll.u32 %s10, 4
      %s1245 = int_to_ptr.hbm [resolvable:$true] %s1244
      %1247 = dma.vmem_to_hbm [thread:$0]  %s1243, 128, %s1245, [#allocation13]
    $region65: #{rnn_model_forward.1} parent=1 // pred_fallthru
      _
    // Predicated region
    $region66: #{rnn_model_forward.1} parent=1 // pred_check
      _
    $region67: #{rnn_model_forward.1} parent=1 // pred_check_branch
      %1249 = sbr.rel (0) target = $region69
    $region68: #{rnn_model_forward.1} parent=1 // pred_region
      %1251 = dma.done [#allocation4], 1024
    $region69: #{rnn_model_forward.1} parent=1 // pred_fallthru
      _
    // Predicated region
    $region70: #{rnn_model_forward.1} parent=1 // pred_check
      _
    $region71: #{rnn_model_forward.1} parent=1 // pred_check_branch
      %1253 = sbr.rel (0) target = $region73
    $region72: #{rnn_model_forward.1} parent=1 // pred_region
      %1255 = dma.done [#allocation13], 128
    $region73: #{rnn_model_forward.1} parent=1 // pred_fallthru
      _
    %1256 = vsyncpa [#allocation3], 1
    %1257 = vsyncpa [#allocation6], 1
    %1258 = vsyncpa [#allocation9], 1
    %1259 = vsyncpa [#allocation4], 1
    %1260 = vsyncpa [#allocation13], 1

</llo_original>
